<compile_context>
chip_gen: v7x
topology: tpu7x:2x2x1
jax: 0.10.0
libtpu: 0.0.40
codegen_flags: <defaults>
</compile_context>

<pallas_src>
import jax
import jax.numpy as jnp
from jax.experimental import pallas as pl
from jax.experimental.pallas import tpu as pltpu


def pretrained_image_classifier_forward(x, conv_w, conv_b):
    """x: (N, C, H, W) f32; conv_w: (F, C, K, K); conv_b: (F,) -> (N, F, 1, 1) f32."""
    if x.ndim == 5:
        # TODO(synk): 5-D (volumetric) branch returns raw img_encoder(x); not exercised here.
        raise NotImplementedError("5-D input path not implemented in this synthetic kernel")

    N, C, H, W = x.shape
    F, _, K, _ = conv_w.shape
    KK = K * K
    pad = K // 2
    Hp, Wp = H + 2 * pad, W + 2 * pad
    HW = H * W

    # ---- batch tiling --------------------------------------------------------
    B_TILE = min(8, N)                       # images per grid step
    G = pl.cdiv(N, B_TILE)                   # grid steps
    N_pad = G * B_TILE

    # Per-image flattened padded-spatial length, rounded up to a 128-lane
    # multiple and leaving >= (K-1) slack so every tap-shifted slice stays
    # inside the tile's block.
    S = ((Hp * Wp + (K - 1) + 127) // 128) * 128
    L = (B_TILE - 1) * S + H * Wp            # conv-output columns computed per tile

    # ---- layout plumbing in plain JAX (no im2col materialized in HBM) -------
    xp = jnp.pad(x, ((0, N_pad - N), (0, 0), (pad, pad), (pad, pad)))   # (N_pad,C,Hp,Wp)
    xp = xp.transpose(1, 0, 2, 3).reshape(C, N_pad, Hp * Wp)
    xp = jnp.pad(xp, ((0, 0), (0, 0), (0, S - Hp * Wp)))
    x_flat = xp.reshape(C, N_pad * S).astype(jnp.bfloat16)              # (C, N_pad*S)

    # Conv weight per tap, transposed for (F,C) x (C,L) dots.
    w_taps = conv_w.transpose(2, 3, 0, 1).reshape(KK, F, C).astype(jnp.bfloat16)
    b_col = conv_b.reshape(F, 1).astype(jnp.float32)

    # Per-image averaging matrix (L, B_TILE): 1/HW on columns that correspond to
    # a real output pixel of image b, 0 on padded / wrapped / ghost columns.
    # Implements AdaptiveAvgPool2d((1,1)) and the junk-column mask on the MXU.
    j = jnp.arange(L)
    r = j % S
    valid = (r // Wp < H) & (r % Wp < W)
    pool_mat = ((j[:, None] // S == jnp.arange(B_TILE)[None, :]) & valid[:, None])
    pool_mat = pool_mat.astype(jnp.float32) * (1.0 / HW)

    def kernel(xf_ref, w_ref, b_ref, p_ref, out_ref):
        xf = xf_ref[...]                     # (C, B_TILE*S) bf16, lane-dense
        w = w_ref[...]                       # (KK, F, C)    bf16
        # 3x3 conv as KK lane-shifted matmuls, accumulated in f32.
        z = jnp.zeros((F, L), jnp.float32)
        for t in range(KK):
            dh, dw = divmod(t, K)
            o = dh * Wp + dw
            z = z + jnp.dot(w[t], xf[:, o:o + L],
                            preferred_element_type=jnp.float32)
        feat = jnp.maximum(z + b_ref[...], 0.0)          # fused bias + ReLU (f32)
        # AdaptiveAvgPool2d((1,1)) == one matmul against the averaging matrix.
        out_ref[0] = jnp.dot(feat, p_ref[...], preferred_element_type=jnp.float32)

    out = pl.pallas_call(
        kernel,
        out_shape=jax.ShapeDtypeStruct((G, F, B_TILE), jnp.float32),
        grid_spec=pltpu.PrefetchScalarGridSpec(
            num_scalar_prefetch=0,
            grid=(G,),
            in_specs=[
                pl.BlockSpec((C, B_TILE * S), lambda i: (0, i)),   # this tile's images
                pl.BlockSpec((KK, F, C), lambda i: (0, 0, 0)),     # shared conv weight
                pl.BlockSpec((F, 1), lambda i: (0, 0)),            # shared bias
                pl.BlockSpec((L, B_TILE), lambda i: (0, 0)),       # shared pool matrix
            ],
            out_specs=pl.BlockSpec((1, F, B_TILE), lambda i: (i, 0, 0)),
        ),
        compiler_params=pltpu.CompilerParams(
            dimension_semantics=("parallel",),      # batch tiles shard across TCs (v7x)
            vmem_limit_bytes=32 * 1024 * 1024,
        ),
    )(x_flat, w_taps, b_col, pool_mat)

    pooled = out.transpose(0, 2, 1).reshape(N_pad, F)[:N]            # (N, F)
    # Match PyTorch AdaptiveAvgPool2d((1,1)) output layout: (N, F, 1, 1)
    return pooled[:, :, None, None]


if __name__ == "__main__":
    key = jax.random.PRNGKey(0)
    k1, k2, k3, k4 = jax.random.split(key, 4)

    N, C, H, W = 2, 4, 16, 16
    FEATURE_DIM = 32     # channels produced by the synthetic img_encoder
    NUM_CLS = 8

    x = jax.random.normal(k1, (N, C, H, W), jnp.float32)

    # synthetic img_encoder params: Conv2d(C, FEATURE_DIM, 3, padding=1) + ReLU
    conv_w = jax.random.normal(k2, (FEATURE_DIM, C, 3, 3), jnp.float32) * 0.1
    conv_b = jax.random.normal(k3, (FEATURE_DIM,), jnp.float32) * 0.1

    # classifier = nn.Linear(1024, num_cls) and pool_mri: initialized for
    # parameter parity only, UNUSED in forward().
    cls_w = jax.random.normal(k4, (NUM_CLS, 1024), jnp.float32) * 0.01
    cls_b = jnp.zeros((NUM_CLS,), jnp.float32)

    y = jax.block_until_ready(pretrained_image_classifier_forward(x, conv_w, conv_b))
    assert y.shape == (N, FEATURE_DIM, 1, 1), y.shape

    # Pure-JAX f32 reference (Conv2d + bias + ReLU, then adaptive avg pool to (1,1))
    ref = jax.lax.conv_general_dilated(
        x, conv_w, (1, 1), "SAME",
        dimension_numbers=("NCHW", "OIHW", "NCHW"))
    ref = jnp.maximum(ref + conv_b[None, :, None, None], 0.0)
    ref = ref.mean(axis=(2, 3))[:, :, None, None]

    # Kernel feeds bf16 activations/weights (f32 accumulation), so compare
    # against the f32 reference with a bf16-appropriate tolerance.
    assert jnp.allclose(y, ref, atol=1e-2, rtol=1e-2), float(jnp.max(jnp.abs(y - ref)))
    print("KERNEL_OK")
</pallas_src>

<mosaic_0001>
module attributes {stable_mosaic.version = 11 : i64} {
  func.func @kernel(%arg0: i32, %arg1: memref<4x768xbf16, #tpu.memory_space<vmem>>, %arg2: memref<9x32x4xbf16, #tpu.memory_space<vmem>>, %arg3: memref<32x1xf32, #tpu.memory_space<vmem>>, %arg4: memref<672x2xf32, #tpu.memory_space<vmem>>, %arg5: memref<1x32x2xf32, #tpu.memory_space<vmem>>) attributes {dimension_semantics = [#tpu.dimension_semantics<parallel>], iteration_bounds = array<i64: 1>, scalar_prefetch = 0 : i64, scratch_operands = 0 : i64, tpu.core_type = #tpu.core_type<tc>, window_params = [{transform_indices = @transform_0, window_bounds = array<i64: 4, 768>}, {pipeline_mode = #tpu.pipeline_mode<synchronous>, transform_indices = @transform_1, window_bounds = array<i64: 9, 32, 4>}, {pipeline_mode = #tpu.pipeline_mode<synchronous>, transform_indices = @transform_2, window_bounds = array<i64: 32, 1>}, {pipeline_mode = #tpu.pipeline_mode<synchronous>, transform_indices = @transform_3, window_bounds = array<i64: 672, 2>}, {transform_indices = @transform_4, window_bounds = array<i64: 1, 32, 2>}]} {
    %c0 = arith.constant 0 : index
    %c0_0 = arith.constant 0 : index
    %0 = vector.load %arg1[%c0, %c0_0] : memref<4x768xbf16, #tpu.memory_space<vmem>>, vector<4x768xbf16>
    %c0_1 = arith.constant 0 : index
    %c0_2 = arith.constant 0 : index
    %c0_3 = arith.constant 0 : index
    %1 = vector.load %arg2[%c0_1, %c0_2, %c0_3] : memref<9x32x4xbf16, #tpu.memory_space<vmem>>, vector<9x32x4xbf16>
    %cst = arith.constant 0.000000e+00 : f32
    %2 = vector.broadcast %cst : f32 to vector<32x672xf32>
    %3 = vector.extract_strided_slice %1 {offsets = [0, 0, 0], sizes = [1, 32, 4], strides = [1, 1, 1]} : vector<9x32x4xbf16> to vector<1x32x4xbf16>
    %4 = vector.shape_cast %3 : vector<1x32x4xbf16> to vector<32x4xbf16>
    %5 = vector.extract_strided_slice %0 {offsets = [0, 0], sizes = [4, 672], strides = [1, 1]} : vector<4x768xbf16> to vector<4x672xbf16>
    %cst_4 = arith.constant dense<0.000000e+00> : vector<32x672xf32>
    %6 = tpu.matmul %4, %5, %cst_4 {dimension_numbers = #tpu.dot_dimension_numbers<[1], [0], [0], [1], [0, 0, 1, 1], [], []>} : vector<32x4xbf16>, vector<4x672xbf16>, vector<32x672xf32> -> vector<32x672xf32>
    %7 = arith.addf %2, %6 : vector<32x672xf32>
    %8 = vector.extract_strided_slice %1 {offsets = [1, 0, 0], sizes = [1, 32, 4], strides = [1, 1, 1]} : vector<9x32x4xbf16> to vector<1x32x4xbf16>
    %9 = vector.shape_cast %8 : vector<1x32x4xbf16> to vector<32x4xbf16>
    %10 = vector.extract_strided_slice %0 {offsets = [0, 1], sizes = [4, 672], strides = [1, 1]} : vector<4x768xbf16> to vector<4x672xbf16>
    %cst_5 = arith.constant dense<0.000000e+00> : vector<32x672xf32>
    %11 = tpu.matmul %9, %10, %cst_5 {dimension_numbers = #tpu.dot_dimension_numbers<[1], [0], [0], [1], [0, 0, 1, 1], [], []>} : vector<32x4xbf16>, vector<4x672xbf16>, vector<32x672xf32> -> vector<32x672xf32>
    %12 = arith.addf %7, %11 : vector<32x672xf32>
    %13 = vector.extract_strided_slice %1 {offsets = [2, 0, 0], sizes = [1, 32, 4], strides = [1, 1, 1]} : vector<9x32x4xbf16> to vector<1x32x4xbf16>
    %14 = vector.shape_cast %13 : vector<1x32x4xbf16> to vector<32x4xbf16>
    %15 = vector.extract_strided_slice %0 {offsets = [0, 2], sizes = [4, 672], strides = [1, 1]} : vector<4x768xbf16> to vector<4x672xbf16>
    %cst_6 = arith.constant dense<0.000000e+00> : vector<32x672xf32>
    %16 = tpu.matmul %14, %15, %cst_6 {dimension_numbers = #tpu.dot_dimension_numbers<[1], [0], [0], [1], [0, 0, 1, 1], [], []>} : vector<32x4xbf16>, vector<4x672xbf16>, vector<32x672xf32> -> vector<32x672xf32>
    %17 = arith.addf %12, %16 : vector<32x672xf32>
    %18 = vector.extract_strided_slice %1 {offsets = [3, 0, 0], sizes = [1, 32, 4], strides = [1, 1, 1]} : vector<9x32x4xbf16> to vector<1x32x4xbf16>
    %19 = vector.shape_cast %18 : vector<1x32x4xbf16> to vector<32x4xbf16>
    %20 = vector.extract_strided_slice %0 {offsets = [0, 18], sizes = [4, 672], strides = [1, 1]} : vector<4x768xbf16> to vector<4x672xbf16>
    %cst_7 = arith.constant dense<0.000000e+00> : vector<32x672xf32>
    %21 = tpu.matmul %19, %20, %cst_7 {dimension_numbers = #tpu.dot_dimension_numbers<[1], [0], [0], [1], [0, 0, 1, 1], [], []>} : vector<32x4xbf16>, vector<4x672xbf16>, vector<32x672xf32> -> vector<32x672xf32>
    %22 = arith.addf %17, %21 : vector<32x672xf32>
    %23 = vector.extract_strided_slice %1 {offsets = [4, 0, 0], sizes = [1, 32, 4], strides = [1, 1, 1]} : vector<9x32x4xbf16> to vector<1x32x4xbf16>
    %24 = vector.shape_cast %23 : vector<1x32x4xbf16> to vector<32x4xbf16>
    %25 = vector.extract_strided_slice %0 {offsets = [0, 19], sizes = [4, 672], strides = [1, 1]} : vector<4x768xbf16> to vector<4x672xbf16>
    %cst_8 = arith.constant dense<0.000000e+00> : vector<32x672xf32>
    %26 = tpu.matmul %24, %25, %cst_8 {dimension_numbers = #tpu.dot_dimension_numbers<[1], [0], [0], [1], [0, 0, 1, 1], [], []>} : vector<32x4xbf16>, vector<4x672xbf16>, vector<32x672xf32> -> vector<32x672xf32>
    %27 = arith.addf %22, %26 : vector<32x672xf32>
    %28 = vector.extract_strided_slice %1 {offsets = [5, 0, 0], sizes = [1, 32, 4], strides = [1, 1, 1]} : vector<9x32x4xbf16> to vector<1x32x4xbf16>
    %29 = vector.shape_cast %28 : vector<1x32x4xbf16> to vector<32x4xbf16>
    %30 = vector.extract_strided_slice %0 {offsets = [0, 20], sizes = [4, 672], strides = [1, 1]} : vector<4x768xbf16> to vector<4x672xbf16>
    %cst_9 = arith.constant dense<0.000000e+00> : vector<32x672xf32>
    %31 = tpu.matmul %29, %30, %cst_9 {dimension_numbers = #tpu.dot_dimension_numbers<[1], [0], [0], [1], [0, 0, 1, 1], [], []>} : vector<32x4xbf16>, vector<4x672xbf16>, vector<32x672xf32> -> vector<32x672xf32>
    %32 = arith.addf %27, %31 : vector<32x672xf32>
    %33 = vector.extract_strided_slice %1 {offsets = [6, 0, 0], sizes = [1, 32, 4], strides = [1, 1, 1]} : vector<9x32x4xbf16> to vector<1x32x4xbf16>
    %34 = vector.shape_cast %33 : vector<1x32x4xbf16> to vector<32x4xbf16>
    %35 = vector.extract_strided_slice %0 {offsets = [0, 36], sizes = [4, 672], strides = [1, 1]} : vector<4x768xbf16> to vector<4x672xbf16>
    %cst_10 = arith.constant dense<0.000000e+00> : vector<32x672xf32>
    %36 = tpu.matmul %34, %35, %cst_10 {dimension_numbers = #tpu.dot_dimension_numbers<[1], [0], [0], [1], [0, 0, 1, 1], [], []>} : vector<32x4xbf16>, vector<4x672xbf16>, vector<32x672xf32> -> vector<32x672xf32>
    %37 = arith.addf %32, %36 : vector<32x672xf32>
    %38 = vector.extract_strided_slice %1 {offsets = [7, 0, 0], sizes = [1, 32, 4], strides = [1, 1, 1]} : vector<9x32x4xbf16> to vector<1x32x4xbf16>
    %39 = vector.shape_cast %38 : vector<1x32x4xbf16> to vector<32x4xbf16>
    %40 = vector.extract_strided_slice %0 {offsets = [0, 37], sizes = [4, 672], strides = [1, 1]} : vector<4x768xbf16> to vector<4x672xbf16>
    %cst_11 = arith.constant dense<0.000000e+00> : vector<32x672xf32>
    %41 = tpu.matmul %39, %40, %cst_11 {dimension_numbers = #tpu.dot_dimension_numbers<[1], [0], [0], [1], [0, 0, 1, 1], [], []>} : vector<32x4xbf16>, vector<4x672xbf16>, vector<32x672xf32> -> vector<32x672xf32>
    %42 = arith.addf %37, %41 : vector<32x672xf32>
    %43 = vector.extract_strided_slice %1 {offsets = [8, 0, 0], sizes = [1, 32, 4], strides = [1, 1, 1]} : vector<9x32x4xbf16> to vector<1x32x4xbf16>
    %44 = vector.shape_cast %43 : vector<1x32x4xbf16> to vector<32x4xbf16>
    %45 = vector.extract_strided_slice %0 {offsets = [0, 38], sizes = [4, 672], strides = [1, 1]} : vector<4x768xbf16> to vector<4x672xbf16>
    %cst_12 = arith.constant dense<0.000000e+00> : vector<32x672xf32>
    %46 = tpu.matmul %44, %45, %cst_12 {dimension_numbers = #tpu.dot_dimension_numbers<[1], [0], [0], [1], [0, 0, 1, 1], [], []>} : vector<32x4xbf16>, vector<4x672xbf16>, vector<32x672xf32> -> vector<32x672xf32>
    %47 = arith.addf %42, %46 : vector<32x672xf32>
    %c0_13 = arith.constant 0 : index
    %c0_14 = arith.constant 0 : index
    %48 = vector.load %arg3[%c0_13, %c0_14] : memref<32x1xf32, #tpu.memory_space<vmem>>, vector<32x1xf32>
    %49 = vector.broadcast %48 : vector<32x1xf32> to vector<32x672xf32>
    %50 = arith.addf %47, %49 : vector<32x672xf32>
    %cst_15 = arith.constant 0.000000e+00 : f32
    %51 = vector.broadcast %cst_15 : f32 to vector<32x672xf32>
    %52 = arith.maximumf %50, %51 : vector<32x672xf32>
    %c0_16 = arith.constant 0 : index
    %c0_17 = arith.constant 0 : index
    %53 = vector.load %arg4[%c0_16, %c0_17] : memref<672x2xf32, #tpu.memory_space<vmem>>, vector<672x2xf32>
    %cst_18 = arith.constant dense<0.000000e+00> : vector<32x2xf32>
    %54 = tpu.matmul %52, %53, %cst_18 {dimension_numbers = #tpu.dot_dimension_numbers<[1], [0], [0], [1], [0, 0, 1, 1], [], []>} : vector<32x672xf32>, vector<672x2xf32>, vector<32x2xf32> -> vector<32x2xf32>
    %c0_19 = arith.constant 0 : index
    %c0_20 = arith.constant 0 : index
    %c0_21 = arith.constant 0 : index
    %55 = vector.load %arg5[%c0_19, %c0_20, %c0_21] : memref<1x32x2xf32, #tpu.memory_space<vmem>>, vector<1x32x2xf32>
    %56 = vector.shape_cast %55 : vector<1x32x2xf32> to vector<32x2xf32>
    %57 = vector.shape_cast %54 : vector<32x2xf32> to vector<1x32x2xf32>
    tpu.vector_store %arg5[%c0_19, %c0_20, %c0_21], %57 {strides = array<i32>} : memref<1x32x2xf32, #tpu.memory_space<vmem>>, vector<1x32x2xf32>,
    return
  }
  func.func @transform_0(%arg0: i32) -> (i32, i32) {
    %c0_i32 = arith.constant 0 : i32
    %c0_i32_0 = arith.constant 0 : i32
    return %c0_i32, %arg0 : i32, i32
  }
  func.func @transform_1(%arg0: i32) -> (i32, i32, i32) {
    %c0_i32 = arith.constant 0 : i32
    %c0_i32_0 = arith.constant 0 : i32
    %c0_i32_1 = arith.constant 0 : i32
    %c0_i32_2 = arith.constant 0 : i32
    return %c0_i32, %c0_i32_0, %c0_i32_1 : i32, i32, i32
  }
  func.func @transform_2(%arg0: i32) -> (i32, i32) {
    %c0_i32 = arith.constant 0 : i32
    %c0_i32_0 = arith.constant 0 : i32
    %c0_i32_1 = arith.constant 0 : i32
    return %c0_i32, %c0_i32_0 : i32, i32
  }
  func.func @transform_3(%arg0: i32) -> (i32, i32) {
    %c0_i32 = arith.constant 0 : i32
    %c0_i32_0 = arith.constant 0 : i32
    %c0_i32_1 = arith.constant 0 : i32
    return %c0_i32, %c0_i32_0 : i32, i32
  }
  func.func @transform_4(%arg0: i32) -> (i32, i32, i32) {
    %c0_i32 = arith.constant 0 : i32
    %c0_i32_0 = arith.constant 0 : i32
    %c0_i32_1 = arith.constant 0 : i32
    return %arg0, %c0_i32, %c0_i32_0 : i32, i32, i32
  }
}

</mosaic_0001>

<llo_original>
// kernel: tpu_custom_call.1
$region0: #{tpu_custom_call.1}
  #allocation0 [shape = 'u32[]', space=smem, size = 0x4, offset = 0x4, fixed_abs, tag = 'smem constant byte address 0x4 - core index']
  #allocation1 [shape = 'u32[144,128]{1,0:T(1,128)}', space=vmem, size = 0x12000, scoped, tag = 'internal scratch']
  %s0 = inlined_call_operand.vmem [shape: bf16[4,768], index: 0, kind: input, shape index: {}]
  %s1 = inlined_call_operand.vmem [shape: bf16[9,32,4], index: 1, kind: input, shape index: {}]
  %s2 = inlined_call_operand.vmem [shape: f32[32,1], index: 2, kind: input, shape index: {}]
  %s3 = inlined_call_operand.vmem [shape: f32[672,2], index: 3, kind: input, shape index: {}]
  %s4 = inlined_call_operand.vmem [shape: f32[1,32,2], index: 4, kind: output, shape index: {}]
  %s5 = sld [smem:[#allocation0]]
  $region26: #{tpu_custom_call.1} parent=0
    _
  %s7 = ssub.s32 1, %s5
  %s8 = scalar_select 0, %s7, %s5
  // Predicated region
  $region2: #{tpu_custom_call.1} parent=0 // pred_check
    _
  $region3: #{tpu_custom_call.1} parent=0 // pred_check_branch
    %10 = sbr.rel (0) target = $region5
  $region4: #{tpu_custom_call.1} parent=0 // pred_region
    _
  $region5: #{tpu_custom_call.1} parent=0 // pred_fallthru
    _
  // Predicated region
  $region6: #{tpu_custom_call.1} parent=0 // pred_check
    _
  $region7: #{tpu_custom_call.1} parent=0 // pred_check_branch
    %12 = sbr.rel (0) target = $region9
  $region8: #{tpu_custom_call.1} parent=0 // pred_region
    _
  $region9: #{tpu_custom_call.1} parent=0 // pred_fallthru
    _
  // Predicated region
  $region10: #{tpu_custom_call.1} parent=0 // pred_check
    _
  $region11: #{tpu_custom_call.1} parent=0 // pred_check_branch
    %14 = sbr.rel (0) target = $region13
  $region12: #{tpu_custom_call.1} parent=0 // pred_region
    _
  $region13: #{tpu_custom_call.1} parent=0 // pred_fallthru
    _
  // Predicated region
  $region14: #{tpu_custom_call.1} parent=0 // pred_check
    _
  $region15: #{tpu_custom_call.1} parent=0 // pred_check_branch
    %16 = sbr.rel (0) target = $region17
  $region16: #{tpu_custom_call.1} parent=0 // pred_region
    _
  $region17: #{tpu_custom_call.1} parent=0 // pred_fallthru
    _
  %v18 = vld [vmem:[%s0] sm:$0xff]
  %v19 = vld [vmem:[%s0 + $0x8] sm:$0xf]
  %v20 = vld [vmem:[%s1] sm:$0xf]
  %v21 = vld [vmem:[%s1 + $0x4] sm:$0xf]
  %v22 = vld [vmem:[%s1 + $0x8] sm:$0xf]
  %v23 = vld [vmem:[%s1 + $0xc] sm:$0xf]
  %v24 = vld [vmem:[%s1 + $0x10] sm:$0xf]
  %v25 = vld [vmem:[%s1 + $0x14] sm:$0xf]
  %v26 = vld [vmem:[%s1 + $0x18] sm:$0xf]
  %v27 = vld [vmem:[%s1 + $0x1c] sm:$0xf]
  %v28 = vld [vmem:[%s1 + $0x20] sm:$0xf]
  %v29 = vld [vmem:[%s1 + $0x24] sm:$0xf]
  %v30 = vld [vmem:[%s1 + $0x28] sm:$0xf]
  %v31 = vld [vmem:[%s1 + $0x2c] sm:$0xf]
  %v32 = vld [vmem:[%s1 + $0x30] sm:$0xf]
  %v33 = vld [vmem:[%s1 + $0x34] sm:$0xf]
  %v34 = vld [vmem:[%s1 + $0x38] sm:$0xf]
  %v35 = vld [vmem:[%s1 + $0x3c] sm:$0xf]
  %v36 = vld [vmem:[%s1 + $0x40] sm:$0xf]
  %v37 = vld [vmem:[%s1 + $0x44] sm:$0xf]
  %v38 = vld [vmem:[%s1 + $0x48] sm:$0xf]
  %v39 = vld [vmem:[%s1 + $0x4c] sm:$0xf]
  %v40 = vld [vmem:[%s1 + $0x50] sm:$0xf]
  %v41 = vld [vmem:[%s1 + $0x54] sm:$0xf]
  %v42 = vld [vmem:[%s1 + $0x58] sm:$0xf]
  %v43 = vld [vmem:[%s1 + $0x5c] sm:$0xf]
  %v44 = vld [vmem:[%s1 + $0x60] sm:$0xf]
  %v45 = vld [vmem:[%s1 + $0x64] sm:$0xf]
  %v46 = vld [vmem:[%s1 + $0x68] sm:$0xf]
  %v47 = vld [vmem:[%s1 + $0x6c] sm:$0xf]
  %v48 = vld [vmem:[%s1 + $0x70] sm:$0xf]
  %v49 = vld [vmem:[%s1 + $0x74] sm:$0xf]
  %v50 = vld [vmem:[%s1 + $0x78] sm:$0xf]
  %v51 = vld [vmem:[%s1 + $0x7c] sm:$0xf]
  %v52 = vld [vmem:[%s1 + $0x80] sm:$0xf]
  %v53 = vld [vmem:[%s1 + $0x84] sm:$0xf]
  %v54 = vld [vmem:[%s1 + $0x88] sm:$0xf]
  %v55 = vld [vmem:[%s1 + $0x8c] sm:$0xf]
  %v60 = vunpack.c.l.b16 %v24
  %v61 = vunpack.c.l.b16 %v25
  %v62 = vunpack.c.l.b16 %v26
  %v63 = vunpack.c.l.b16 %v27
  %v64 = vpack.c.b16 %v61, %v60
  %v65 = vpack.c.b16 %v63, %v62
  %v68 = vcombine.high %v18, %v18
  %v70 = vunpack.c.l.s4 1983009808
  %v71 = vunpack.c.0.s8 %v70
  %v72 = vlaneseq
  %v73 = vshrl.u32 %v72, 7
  %v74 = vsub.s32 %v71, %v73
  %v75 = vrot.slane %v18, %v74
  %v77 = vunpack.c.l.s4 1983009808
  %v78 = vunpack.c.0.s8 %v77
  %v79 = vlaneseq
  %v80 = vshrl.u32 %v79, 7
  %v81 = vsub.s32 %v78, %v80
  %v82 = vrot.slane %v68, %v81
  %v83 = vcombine.high %v75, %v75
  %v84 = vcombine.high %v82, %v82
  %v86 = vunpack.c.l.s4 1983009808
  %v87 = vunpack.c.0.s8 %v86
  %v88 = vlaneseq
  %v89 = vshrl.u32 %v88, 7
  %v90 = vsub.s32 %v87, %v89
  %v91 = vrot.slane %v19, %v90
  %v92 = vcombine.high %v91, %v91
  %93 = vrot.lane.b32.xlu0 %v75, 127
  %v94 = vpop.permute.xlu0 %93
  %95 = vrot.lane.b32.xlu0 %v83, 127
  %v96 = vpop.permute.xlu0 %95
  %97 = vrot.lane.b32.xlu0 %v82, 127
  %v98 = vpop.permute.xlu0 %97
  %99 = vrot.lane.b32.xlu0 %v84, 127
  %v100 = vpop.permute.xlu0 %99
  %101 = vrot.lane.b32.xlu0 %v91, 127
  %v102 = vpop.permute.xlu0 %101
  %103 = vrot.lane.b32.xlu0 %v92, 127
  %v104 = vpop.permute.xlu0 %103
  %vm105 = vcmask 1039360
  %v106 = vsel %vm105, %v94, %v96
  %v107 = vsel %vm105, %v96, %v98
  %v108 = vsel %vm105, %v98, %v100
  %v109 = vsel %vm105, %v100, %v102
  %v110 = vsel %vm105, %v102, %v104
  %vm111 = vcmask 31744
  %v113 = vsel %vm111, %v64, 0
  %v116 = vsel %vm111, %v65, 0
  %vm118 = vcmask 1041408
  %v120 = vsel %vm118, %v106, 0
  %v123 = vsel %vm118, %v107, 0
  %v126 = vsel %vm118, %v108, 0
  %v129 = vsel %vm118, %v109, 0
  %v132 = vsel %vm118, %v110, 0
  %v135 = vsel %vm118, %v104, 0
  %137 = vmatprep.subr.bf16.mxu0 %v123
  %138 = vmatpush1.bf16.msra.mxu0 %v120
  %139 = vmatprep.subr.bf16.mxu0 0
  %140 = vmatpush1.bf16.msra.mxu0 0
  %141 = vmatprep.subr.bf16.mxu0 0
  %142 = vmatpush1.bf16.msra.mxu0 0
  %143 = vmatprep.subr.bf16.mxu0 0
  %144 = vmatpush1.bf16.msra.mxu0 0
  %145 = vmatprep.subr.bf16.mxu0 0
  %146 = vmatpush1.bf16.msra.mxu0 0
  %147 = vmatprep.subr.bf16.mxu0 0
  %148 = vmatpush1.bf16.msra.mxu0 0
  %149 = vmatprep.subr.bf16.mxu0 0
  %150 = vmatpush1.bf16.msra.mxu0 0
  %151 = vmatprep.subr.bf16.mxu0 0
  %152 = vmatpush1.bf16.msra.mxu0 0
  %153 = vmatprep.subr.bf16.mxu0 0
  %154 = vmatpush1.bf16.msra.mxu0 0
  %155 = vmatprep.subr.bf16.mxu0 0
  %156 = vmatpush1.bf16.msra.mxu0 0
  %157 = vmatprep.subr.bf16.mxu0 0
  %158 = vmatpush1.bf16.msra.mxu0 0
  %159 = vmatprep.subr.bf16.mxu0 0
  %160 = vmatpush1.bf16.msra.mxu0 0
  %161 = vmatprep.subr.bf16.mxu0 0
  %162 = vmatpush1.bf16.msra.mxu0 0
  %163 = vmatprep.subr.bf16.mxu0 0
  %164 = vmatpush1.bf16.msra.mxu0 0
  %165 = vmatprep.subr.bf16.mxu0 0
  %166 = vmatpush1.bf16.msra.mxu0 0
  %167 = vmatprep.subr.bf16.mxu0 0
  %168 = vmatpush1.bf16.msra.mxu0 0
  %169 = vmatprep.mubr.bf16.mxu0 0
  %170 = vmatmul.mubr.bf16.gmra.mrb[0].mxu0 %v113
  %v171 = vpop.f32.mrb[0].mxu0
  %v172 = vadd.f32 0.0, %v171
  %v173 = vpop.f32.mrb[0].mxu0
  %v174 = vadd.f32 0.0, %v173
  %v175 = vpop.f32.mrb[0].mxu0
  %v176 = vadd.f32 0.0, %v175
  %v177 = vpop.f32.mrb[0].mxu0
  %v178 = vadd.f32 0.0, %v177
  %179 = vmatprep.mubr.bf16.mxu0 0
  %180 = vmatmul.mubr.bf16.gmra.mrb[0].mxu0 %v116
  %v181 = vpop.f32.mrb[0].mxu0
  %v182 = vadd.f32 0.0, %v181
  %v183 = vpop.f32.mrb[0].mxu0
  %v184 = vadd.f32 0.0, %v183
  %v185 = vpop.f32.mrb[0].mxu0
  %v186 = vadd.f32 0.0, %v185
  %v187 = vpop.f32.mrb[0].mxu0
  %v188 = vadd.f32 0.0, %v187
  %189 = vdwg.mxu0
  %190 = vmatprep.subr.bf16.mxu0 %v129
  %191 = vmatpush1.bf16.msra.mxu0 %v126
  %192 = vmatprep.subr.bf16.mxu0 0
  %193 = vmatpush1.bf16.msra.mxu0 0
  %194 = vmatprep.subr.bf16.mxu0 0
  %195 = vmatpush1.bf16.msra.mxu0 0
  %196 = vmatprep.subr.bf16.mxu0 0
  %197 = vmatpush1.bf16.msra.mxu0 0
  %198 = vmatprep.subr.bf16.mxu0 0
  %199 = vmatpush1.bf16.msra.mxu0 0
  %200 = vmatprep.subr.bf16.mxu0 0
  %201 = vmatpush1.bf16.msra.mxu0 0
  %202 = vmatprep.subr.bf16.mxu0 0
  %203 = vmatpush1.bf16.msra.mxu0 0
  %204 = vmatprep.subr.bf16.mxu0 0
  %205 = vmatpush1.bf16.msra.mxu0 0
  %206 = vmatprep.subr.bf16.mxu0 0
  %207 = vmatpush1.bf16.msra.mxu0 0
  %208 = vmatprep.subr.bf16.mxu0 0
  %209 = vmatpush1.bf16.msra.mxu0 0
  %210 = vmatprep.subr.bf16.mxu0 0
  %211 = vmatpush1.bf16.msra.mxu0 0
  %212 = vmatprep.subr.bf16.mxu0 0
  %213 = vmatpush1.bf16.msra.mxu0 0
  %214 = vmatprep.subr.bf16.mxu0 0
  %215 = vmatpush1.bf16.msra.mxu0 0
  %216 = vmatprep.subr.bf16.mxu0 0
  %217 = vmatpush1.bf16.msra.mxu0 0
  %218 = vmatprep.subr.bf16.mxu0 0
  %219 = vmatpush1.bf16.msra.mxu0 0
  %220 = vmatprep.subr.bf16.mxu0 0
  %221 = vmatpush1.bf16.msra.mxu0 0
  %222 = vmatprep.mubr.bf16.mxu0 0
  %223 = vmatmul.mubr.bf16.gmra.mrb[0].mxu0 %v113
  %v224 = vpop.f32.mrb[0].mxu0
  %v225 = vadd.f32 0.0, %v224
  %v226 = vpop.f32.mrb[0].mxu0
  %v227 = vadd.f32 0.0, %v226
  %v228 = vpop.f32.mrb[0].mxu0
  %v229 = vadd.f32 0.0, %v228
  %v230 = vpop.f32.mrb[0].mxu0
  %v231 = vadd.f32 0.0, %v230
  %232 = vmatprep.mubr.bf16.mxu0 0
  %233 = vmatmul.mubr.bf16.gmra.mrb[0].mxu0 %v116
  %v234 = vpop.f32.mrb[0].mxu0
  %v235 = vadd.f32 0.0, %v234
  %v236 = vpop.f32.mrb[0].mxu0
  %v237 = vadd.f32 0.0, %v236
  %v238 = vpop.f32.mrb[0].mxu0
  %v239 = vadd.f32 0.0, %v238
  %v240 = vpop.f32.mrb[0].mxu0
  %v241 = vadd.f32 0.0, %v240
  %242 = vdwg.mxu0
  %243 = vmatprep.subr.bf16.mxu0 %v135
  %244 = vmatpush1.bf16.msra.mxu0 %v132
  %245 = vmatprep.subr.bf16.mxu0 0
  %246 = vmatpush1.bf16.msra.mxu0 0
  %247 = vmatprep.subr.bf16.mxu0 0
  %248 = vmatpush1.bf16.msra.mxu0 0
  %249 = vmatprep.subr.bf16.mxu0 0
  %250 = vmatpush1.bf16.msra.mxu0 0
  %251 = vmatprep.subr.bf16.mxu0 0
  %252 = vmatpush1.bf16.msra.mxu0 0
  %253 = vmatprep.subr.bf16.mxu0 0
  %254 = vmatpush1.bf16.msra.mxu0 0
  %255 = vmatprep.subr.bf16.mxu0 0
  %256 = vmatpush1.bf16.msra.mxu0 0
  %257 = vmatprep.subr.bf16.mxu0 0
  %258 = vmatpush1.bf16.msra.mxu0 0
  %259 = vmatprep.subr.bf16.mxu0 0
  %260 = vmatpush1.bf16.msra.mxu0 0
  %261 = vmatprep.subr.bf16.mxu0 0
  %262 = vmatpush1.bf16.msra.mxu0 0
  %263 = vmatprep.subr.bf16.mxu0 0
  %264 = vmatpush1.bf16.msra.mxu0 0
  %265 = vmatprep.subr.bf16.mxu0 0
  %266 = vmatpush1.bf16.msra.mxu0 0
  %267 = vmatprep.subr.bf16.mxu0 0
  %268 = vmatpush1.bf16.msra.mxu0 0
  %269 = vmatprep.subr.bf16.mxu0 0
  %270 = vmatpush1.bf16.msra.mxu0 0
  %271 = vmatprep.subr.bf16.mxu0 0
  %272 = vmatpush1.bf16.msra.mxu0 0
  %273 = vmatprep.subr.bf16.mxu0 0
  %274 = vmatpush1.bf16.msra.mxu0 0
  %275 = vmatprep.mubr.bf16.mxu0 0
  %276 = vmatmul.mubr.bf16.gmra.mrb[0].mxu0 %v113
  %v277 = vpop.f32.mrb[0].mxu0
  %v278 = vadd.f32 0.0, %v277
  %v279 = vpop.f32.mrb[0].mxu0
  %v280 = vadd.f32 0.0, %v279
  %v281 = vpop.f32.mrb[0].mxu0
  %v282 = vadd.f32 0.0, %v281
  %v283 = vpop.f32.mrb[0].mxu0
  %v284 = vadd.f32 0.0, %v283
  %285 = vmatprep.mubr.bf16.mxu0 0
  %286 = vmatmul.mubr.bf16.gmra.mrb[0].mxu0 %v116
  %v287 = vpop.f32.mrb[0].mxu0
  %v288 = vadd.f32 0.0, %v287
  %v289 = vpop.f32.mrb[0].mxu0
  %v290 = vadd.f32 0.0, %v289
  %v291 = vpop.f32.mrb[0].mxu0
  %v292 = vadd.f32 0.0, %v291
  %v293 = vpop.f32.mrb[0].mxu0
  %v294 = vadd.f32 0.0, %v293
  %295 = vdwg.mxu0
  %v300 = vunpack.c.l.b16 %v20
  %v301 = vunpack.c.l.b16 %v21
  %v302 = vunpack.c.l.b16 %v22
  %v303 = vunpack.c.l.b16 %v23
  %v304 = vpack.c.b16 %v301, %v300
  %v305 = vpack.c.b16 %v303, %v302
  %v307 = vsel %vm111, %v304, 0
  %v310 = vsel %vm111, %v305, 0
  %v313 = vsel %vm118, %v75, 0
  %v316 = vsel %vm118, %v83, 0
  %v319 = vsel %vm118, %v82, 0
  %v322 = vsel %vm118, %v84, 0
  %v325 = vsel %vm118, %v91, 0
  %v328 = vsel %vm118, %v92, 0
  %330 = vmatprep.subr.bf16.mxu0 %v316
  %331 = vmatpush1.bf16.msra.mxu0 %v313
  %332 = vmatprep.subr.bf16.mxu0 0
  %333 = vmatpush1.bf16.msra.mxu0 0
  %334 = vmatprep.subr.bf16.mxu0 0
  %335 = vmatpush1.bf16.msra.mxu0 0
  %336 = vmatprep.subr.bf16.mxu0 0
  %337 = vmatpush1.bf16.msra.mxu0 0
  %338 = vmatprep.subr.bf16.mxu0 0
  %339 = vmatpush1.bf16.msra.mxu0 0
  %340 = vmatprep.subr.bf16.mxu0 0
  %341 = vmatpush1.bf16.msra.mxu0 0
  %342 = vmatprep.subr.bf16.mxu0 0
  %343 = vmatpush1.bf16.msra.mxu0 0
  %344 = vmatprep.subr.bf16.mxu0 0
  %345 = vmatpush1.bf16.msra.mxu0 0
  %346 = vmatprep.subr.bf16.mxu0 0
  %347 = vmatpush1.bf16.msra.mxu0 0
  %348 = vmatprep.subr.bf16.mxu0 0
  %349 = vmatpush1.bf16.msra.mxu0 0
  %350 = vmatprep.subr.bf16.mxu0 0
  %351 = vmatpush1.bf16.msra.mxu0 0
  %352 = vmatprep.subr.bf16.mxu0 0
  %353 = vmatpush1.bf16.msra.mxu0 0
  %354 = vmatprep.subr.bf16.mxu0 0
  %355 = vmatpush1.bf16.msra.mxu0 0
  %356 = vmatprep.subr.bf16.mxu0 0
  %357 = vmatpush1.bf16.msra.mxu0 0
  %358 = vmatprep.subr.bf16.mxu0 0
  %359 = vmatpush1.bf16.msra.mxu0 0
  %360 = vmatprep.subr.bf16.mxu0 0
  %361 = vmatpush1.bf16.msra.mxu0 0
  %362 = vmatprep.mubr.bf16.mxu0 0
  %363 = vmatmul.mubr.bf16.gmra.mrb[0].mxu0 %v307
  %v364 = vpop.f32.mrb[0].mxu0
  %v365 = vadd.f32 %v172, %v364
  %v366 = vpop.f32.mrb[0].mxu0
  %v367 = vadd.f32 %v174, %v366
  %v368 = vpop.f32.mrb[0].mxu0
  %v369 = vadd.f32 %v176, %v368
  %v370 = vpop.f32.mrb[0].mxu0
  %v371 = vadd.f32 %v178, %v370
  %372 = vmatprep.mubr.bf16.mxu0 0
  %373 = vmatmul.mubr.bf16.gmra.mrb[0].mxu0 %v310
  %v374 = vpop.f32.mrb[0].mxu0
  %v375 = vadd.f32 %v182, %v374
  %v376 = vpop.f32.mrb[0].mxu0
  %v377 = vadd.f32 %v184, %v376
  %v378 = vpop.f32.mrb[0].mxu0
  %v379 = vadd.f32 %v186, %v378
  %v380 = vpop.f32.mrb[0].mxu0
  %v381 = vadd.f32 %v188, %v380
  %382 = vdwg.mxu0
  %383 = vmatprep.subr.bf16.mxu0 %v322
  %384 = vmatpush1.bf16.msra.mxu0 %v319
  %385 = vmatprep.subr.bf16.mxu0 0
  %386 = vmatpush1.bf16.msra.mxu0 0
  %387 = vmatprep.subr.bf16.mxu0 0
  %388 = vmatpush1.bf16.msra.mxu0 0
  %389 = vmatprep.subr.bf16.mxu0 0
  %390 = vmatpush1.bf16.msra.mxu0 0
  %391 = vmatprep.subr.bf16.mxu0 0
  %392 = vmatpush1.bf16.msra.mxu0 0
  %393 = vmatprep.subr.bf16.mxu0 0
  %394 = vmatpush1.bf16.msra.mxu0 0
  %395 = vmatprep.subr.bf16.mxu0 0
  %396 = vmatpush1.bf16.msra.mxu0 0
  %397 = vmatprep.subr.bf16.mxu0 0
  %398 = vmatpush1.bf16.msra.mxu0 0
  %399 = vmatprep.subr.bf16.mxu0 0
  %400 = vmatpush1.bf16.msra.mxu0 0
  %401 = vmatprep.subr.bf16.mxu0 0
  %402 = vmatpush1.bf16.msra.mxu0 0
  %403 = vmatprep.subr.bf16.mxu0 0
  %404 = vmatpush1.bf16.msra.mxu0 0
  %405 = vmatprep.subr.bf16.mxu0 0
  %406 = vmatpush1.bf16.msra.mxu0 0
  %407 = vmatprep.subr.bf16.mxu0 0
  %408 = vmatpush1.bf16.msra.mxu0 0
  %409 = vmatprep.subr.bf16.mxu0 0
  %410 = vmatpush1.bf16.msra.mxu0 0
  %411 = vmatprep.subr.bf16.mxu0 0
  %412 = vmatpush1.bf16.msra.mxu0 0
  %413 = vmatprep.subr.bf16.mxu0 0
  %414 = vmatpush1.bf16.msra.mxu0 0
  %415 = vmatprep.mubr.bf16.mxu0 0
  %416 = vmatmul.mubr.bf16.gmra.mrb[0].mxu0 %v307
  %v417 = vpop.f32.mrb[0].mxu0
  %v418 = vadd.f32 %v225, %v417
  %v419 = vpop.f32.mrb[0].mxu0
  %v420 = vadd.f32 %v227, %v419
  %v421 = vpop.f32.mrb[0].mxu0
  %v422 = vadd.f32 %v229, %v421
  %v423 = vpop.f32.mrb[0].mxu0
  %v424 = vadd.f32 %v231, %v423
  %425 = vmatprep.mubr.bf16.mxu0 0
  %426 = vmatmul.mubr.bf16.gmra.mrb[0].mxu0 %v310
  %v427 = vpop.f32.mrb[0].mxu0
  %v428 = vadd.f32 %v235, %v427
  %v429 = vpop.f32.mrb[0].mxu0
  %v430 = vadd.f32 %v237, %v429
  %v431 = vpop.f32.mrb[0].mxu0
  %v432 = vadd.f32 %v239, %v431
  %v433 = vpop.f32.mrb[0].mxu0
  %v434 = vadd.f32 %v241, %v433
  %435 = vdwg.mxu0
  %436 = vmatprep.subr.bf16.mxu0 %v328
  %437 = vmatpush1.bf16.msra.mxu0 %v325
  %438 = vmatprep.subr.bf16.mxu0 0
  %439 = vmatpush1.bf16.msra.mxu0 0
  %440 = vmatprep.subr.bf16.mxu0 0
  %441 = vmatpush1.bf16.msra.mxu0 0
  %442 = vmatprep.subr.bf16.mxu0 0
  %443 = vmatpush1.bf16.msra.mxu0 0
  %444 = vmatprep.subr.bf16.mxu0 0
  %445 = vmatpush1.bf16.msra.mxu0 0
  %446 = vmatprep.subr.bf16.mxu0 0
  %447 = vmatpush1.bf16.msra.mxu0 0
  %448 = vmatprep.subr.bf16.mxu0 0
  %449 = vmatpush1.bf16.msra.mxu0 0
  %450 = vmatprep.subr.bf16.mxu0 0
  %451 = vmatpush1.bf16.msra.mxu0 0
  %452 = vmatprep.subr.bf16.mxu0 0
  %453 = vmatpush1.bf16.msra.mxu0 0
  %454 = vmatprep.subr.bf16.mxu0 0
  %455 = vmatpush1.bf16.msra.mxu0 0
  %456 = vmatprep.subr.bf16.mxu0 0
  %457 = vmatpush1.bf16.msra.mxu0 0
  %458 = vmatprep.subr.bf16.mxu0 0
  %459 = vmatpush1.bf16.msra.mxu0 0
  %460 = vmatprep.subr.bf16.mxu0 0
  %461 = vmatpush1.bf16.msra.mxu0 0
  %462 = vmatprep.subr.bf16.mxu0 0
  %463 = vmatpush1.bf16.msra.mxu0 0
  %464 = vmatprep.subr.bf16.mxu0 0
  %465 = vmatpush1.bf16.msra.mxu0 0
  %466 = vmatprep.subr.bf16.mxu0 0
  %467 = vmatpush1.bf16.msra.mxu0 0
  %468 = vmatprep.mubr.bf16.mxu0 0
  %469 = vmatmul.mubr.bf16.gmra.mrb[0].mxu0 %v307
  %v470 = vpop.f32.mrb[0].mxu0
  %v471 = vadd.f32 %v278, %v470
  %v472 = vpop.f32.mrb[0].mxu0
  %v473 = vadd.f32 %v280, %v472
  %v474 = vpop.f32.mrb[0].mxu0
  %v475 = vadd.f32 %v282, %v474
  %v476 = vpop.f32.mrb[0].mxu0
  %v477 = vadd.f32 %v284, %v476
  %478 = vmatprep.mubr.bf16.mxu0 0
  %479 = vmatmul.mubr.bf16.gmra.mrb[0].mxu0 %v310
  %v480 = vpop.f32.mrb[0].mxu0
  %v481 = vadd.f32 %v288, %v480
  %v482 = vpop.f32.mrb[0].mxu0
  %v483 = vadd.f32 %v290, %v482
  %v484 = vpop.f32.mrb[0].mxu0
  %v485 = vadd.f32 %v292, %v484
  %v486 = vpop.f32.mrb[0].mxu0
  %v487 = vadd.f32 %v294, %v486
  %488 = vdwg.mxu0
  %v493 = vunpack.c.l.b16 %v28
  %v494 = vunpack.c.l.b16 %v29
  %v495 = vunpack.c.l.b16 %v30
  %v496 = vunpack.c.l.b16 %v31
  %v497 = vpack.c.b16 %v494, %v493
  %v498 = vpack.c.b16 %v496, %v495
  %499 = vrot.lane.b32.xlu0 %v75, 126
  %v500 = vpop.permute.xlu0 %499
  %501 = vrot.lane.b32.xlu0 %v83, 126
  %v502 = vpop.permute.xlu0 %501
  %503 = vrot.lane.b32.xlu0 %v82, 126
  %v504 = vpop.permute.xlu0 %503
  %505 = vrot.lane.b32.xlu0 %v84, 126
  %v506 = vpop.permute.xlu0 %505
  %507 = vrot.lane.b32.xlu0 %v91, 126
  %v508 = vpop.permute.xlu0 %507
  %509 = vrot.lane.b32.xlu0 %v92, 126
  %v510 = vpop.permute.xlu0 %509
  %vm511 = vcmask 1031168
  %v512 = vsel %vm511, %v500, %v502
  %v513 = vsel %vm511, %v502, %v504
  %v514 = vsel %vm511, %v504, %v506
  %v515 = vsel %vm511, %v506, %v508
  %v516 = vsel %vm511, %v508, %v510
  %v518 = vsel %vm111, %v497, 0
  %v521 = vsel %vm111, %v498, 0
  %v524 = vsel %vm118, %v512, 0
  %v527 = vsel %vm118, %v513, 0
  %v530 = vsel %vm118, %v514, 0
  %v533 = vsel %vm118, %v515, 0
  %v536 = vsel %vm118, %v516, 0
  %v539 = vsel %vm118, %v510, 0
  %541 = vmatprep.subr.bf16.mxu0 %v527
  %542 = vmatpush1.bf16.msra.mxu0 %v524
  %543 = vmatprep.subr.bf16.mxu0 0
  %544 = vmatpush1.bf16.msra.mxu0 0
  %545 = vmatprep.subr.bf16.mxu0 0
  %546 = vmatpush1.bf16.msra.mxu0 0
  %547 = vmatprep.subr.bf16.mxu0 0
  %548 = vmatpush1.bf16.msra.mxu0 0
  %549 = vmatprep.subr.bf16.mxu0 0
  %550 = vmatpush1.bf16.msra.mxu0 0
  %551 = vmatprep.subr.bf16.mxu0 0
  %552 = vmatpush1.bf16.msra.mxu0 0
  %553 = vmatprep.subr.bf16.mxu0 0
  %554 = vmatpush1.bf16.msra.mxu0 0
  %555 = vmatprep.subr.bf16.mxu0 0
  %556 = vmatpush1.bf16.msra.mxu0 0
  %557 = vmatprep.subr.bf16.mxu0 0
  %558 = vmatpush1.bf16.msra.mxu0 0
  %559 = vmatprep.subr.bf16.mxu0 0
  %560 = vmatpush1.bf16.msra.mxu0 0
  %561 = vmatprep.subr.bf16.mxu0 0
  %562 = vmatpush1.bf16.msra.mxu0 0
  %563 = vmatprep.subr.bf16.mxu0 0
  %564 = vmatpush1.bf16.msra.mxu0 0
  %565 = vmatprep.subr.bf16.mxu0 0
  %566 = vmatpush1.bf16.msra.mxu0 0
  %567 = vmatprep.subr.bf16.mxu0 0
  %568 = vmatpush1.bf16.msra.mxu0 0
  %569 = vmatprep.subr.bf16.mxu0 0
  %570 = vmatpush1.bf16.msra.mxu0 0
  %571 = vmatprep.subr.bf16.mxu0 0
  %572 = vmatpush1.bf16.msra.mxu0 0
  %573 = vmatprep.mubr.bf16.mxu0 0
  %574 = vmatmul.mubr.bf16.gmra.mrb[0].mxu0 %v518
  %v575 = vpop.f32.mrb[0].mxu0
  %v576 = vadd.f32 0.0, %v575
  %v577 = vpop.f32.mrb[0].mxu0
  %v578 = vadd.f32 0.0, %v577
  %v579 = vpop.f32.mrb[0].mxu0
  %v580 = vadd.f32 0.0, %v579
  %v581 = vpop.f32.mrb[0].mxu0
  %v582 = vadd.f32 0.0, %v581
  %583 = vmatprep.mubr.bf16.mxu0 0
  %584 = vmatmul.mubr.bf16.gmra.mrb[0].mxu0 %v521
  %v585 = vpop.f32.mrb[0].mxu0
  %v586 = vadd.f32 0.0, %v585
  %v587 = vpop.f32.mrb[0].mxu0
  %v588 = vadd.f32 0.0, %v587
  %v589 = vpop.f32.mrb[0].mxu0
  %v590 = vadd.f32 0.0, %v589
  %v591 = vpop.f32.mrb[0].mxu0
  %v592 = vadd.f32 0.0, %v591
  %593 = vdwg.mxu0
  %594 = vmatprep.subr.bf16.mxu0 %v533
  %595 = vmatpush1.bf16.msra.mxu0 %v530
  %596 = vmatprep.subr.bf16.mxu0 0
  %597 = vmatpush1.bf16.msra.mxu0 0
  %598 = vmatprep.subr.bf16.mxu0 0
  %599 = vmatpush1.bf16.msra.mxu0 0
  %600 = vmatprep.subr.bf16.mxu0 0
  %601 = vmatpush1.bf16.msra.mxu0 0
  %602 = vmatprep.subr.bf16.mxu0 0
  %603 = vmatpush1.bf16.msra.mxu0 0
  %604 = vmatprep.subr.bf16.mxu0 0
  %605 = vmatpush1.bf16.msra.mxu0 0
  %606 = vmatprep.subr.bf16.mxu0 0
  %607 = vmatpush1.bf16.msra.mxu0 0
  %608 = vmatprep.subr.bf16.mxu0 0
  %609 = vmatpush1.bf16.msra.mxu0 0
  %610 = vmatprep.subr.bf16.mxu0 0
  %611 = vmatpush1.bf16.msra.mxu0 0
  %612 = vmatprep.subr.bf16.mxu0 0
  %613 = vmatpush1.bf16.msra.mxu0 0
  %614 = vmatprep.subr.bf16.mxu0 0
  %615 = vmatpush1.bf16.msra.mxu0 0
  %616 = vmatprep.subr.bf16.mxu0 0
  %617 = vmatpush1.bf16.msra.mxu0 0
  %618 = vmatprep.subr.bf16.mxu0 0
  %619 = vmatpush1.bf16.msra.mxu0 0
  %620 = vmatprep.subr.bf16.mxu0 0
  %621 = vmatpush1.bf16.msra.mxu0 0
  %622 = vmatprep.subr.bf16.mxu0 0
  %623 = vmatpush1.bf16.msra.mxu0 0
  %624 = vmatprep.subr.bf16.mxu0 0
  %625 = vmatpush1.bf16.msra.mxu0 0
  %626 = vmatprep.mubr.bf16.mxu0 0
  %627 = vmatmul.mubr.bf16.gmra.mrb[0].mxu0 %v518
  %v628 = vpop.f32.mrb[0].mxu0
  %v629 = vadd.f32 0.0, %v628
  %v630 = vpop.f32.mrb[0].mxu0
  %v631 = vadd.f32 0.0, %v630
  %v632 = vpop.f32.mrb[0].mxu0
  %v633 = vadd.f32 0.0, %v632
  %v634 = vpop.f32.mrb[0].mxu0
  %v635 = vadd.f32 0.0, %v634
  %636 = vmatprep.mubr.bf16.mxu0 0
  %637 = vmatmul.mubr.bf16.gmra.mrb[0].mxu0 %v521
  %v638 = vpop.f32.mrb[0].mxu0
  %v639 = vadd.f32 0.0, %v638
  %v640 = vpop.f32.mrb[0].mxu0
  %v641 = vadd.f32 0.0, %v640
  %v642 = vpop.f32.mrb[0].mxu0
  %v643 = vadd.f32 0.0, %v642
  %v644 = vpop.f32.mrb[0].mxu0
  %v645 = vadd.f32 0.0, %v644
  %646 = vdwg.mxu0
  %647 = vmatprep.subr.bf16.mxu0 %v539
  %648 = vmatpush1.bf16.msra.mxu0 %v536
  %649 = vmatprep.subr.bf16.mxu0 0
  %650 = vmatpush1.bf16.msra.mxu0 0
  %651 = vmatprep.subr.bf16.mxu0 0
  %652 = vmatpush1.bf16.msra.mxu0 0
  %653 = vmatprep.subr.bf16.mxu0 0
  %654 = vmatpush1.bf16.msra.mxu0 0
  %655 = vmatprep.subr.bf16.mxu0 0
  %656 = vmatpush1.bf16.msra.mxu0 0
  %657 = vmatprep.subr.bf16.mxu0 0
  %658 = vmatpush1.bf16.msra.mxu0 0
  %659 = vmatprep.subr.bf16.mxu0 0
  %660 = vmatpush1.bf16.msra.mxu0 0
  %661 = vmatprep.subr.bf16.mxu0 0
  %662 = vmatpush1.bf16.msra.mxu0 0
  %663 = vmatprep.subr.bf16.mxu0 0
  %664 = vmatpush1.bf16.msra.mxu0 0
  %665 = vmatprep.subr.bf16.mxu0 0
  %666 = vmatpush1.bf16.msra.mxu0 0
  %667 = vmatprep.subr.bf16.mxu0 0
  %668 = vmatpush1.bf16.msra.mxu0 0
  %669 = vmatprep.subr.bf16.mxu0 0
  %670 = vmatpush1.bf16.msra.mxu0 0
  %671 = vmatprep.subr.bf16.mxu0 0
  %672 = vmatpush1.bf16.msra.mxu0 0
  %673 = vmatprep.subr.bf16.mxu0 0
  %674 = vmatpush1.bf16.msra.mxu0 0
  %675 = vmatprep.subr.bf16.mxu0 0
  %676 = vmatpush1.bf16.msra.mxu0 0
  %677 = vmatprep.subr.bf16.mxu0 0
  %678 = vmatpush1.bf16.msra.mxu0 0
  %679 = vmatprep.mubr.bf16.mxu0 0
  %680 = vmatmul.mubr.bf16.gmra.mrb[0].mxu0 %v518
  %v681 = vpop.f32.mrb[0].mxu0
  %v682 = vadd.f32 0.0, %v681
  %v683 = vpop.f32.mrb[0].mxu0
  %v684 = vadd.f32 0.0, %v683
  %v685 = vpop.f32.mrb[0].mxu0
  %v686 = vadd.f32 0.0, %v685
  %v687 = vpop.f32.mrb[0].mxu0
  %v688 = vadd.f32 0.0, %v687
  %689 = vmatprep.mubr.bf16.mxu0 0
  %690 = vmatmul.mubr.bf16.gmra.mrb[0].mxu0 %v521
  %v691 = vpop.f32.mrb[0].mxu0
  %v692 = vadd.f32 0.0, %v691
  %v693 = vpop.f32.mrb[0].mxu0
  %v694 = vadd.f32 0.0, %v693
  %v695 = vpop.f32.mrb[0].mxu0
  %v696 = vadd.f32 0.0, %v695
  %v697 = vpop.f32.mrb[0].mxu0
  %v698 = vadd.f32 0.0, %v697
  %699 = vdwg.mxu0
  %v700 = vadd.f32 %v365, %v576
  %v701 = vadd.f32 %v367, %v578
  %v702 = vadd.f32 %v418, %v629
  %v703 = vadd.f32 %v420, %v631
  %v704 = vadd.f32 %v471, %v682
  %v705 = vadd.f32 %v473, %v684
  %v706 = vadd.f32 %v369, %v580
  %v707 = vadd.f32 %v371, %v582
  %v708 = vadd.f32 %v422, %v633
  %v709 = vadd.f32 %v424, %v635
  %v710 = vadd.f32 %v475, %v686
  %v711 = vadd.f32 %v477, %v688
  %v712 = vadd.f32 %v375, %v586
  %v713 = vadd.f32 %v377, %v588
  %v714 = vadd.f32 %v428, %v639
  %v715 = vadd.f32 %v430, %v641
  %v716 = vadd.f32 %v481, %v692
  %v717 = vadd.f32 %v483, %v694
  %v718 = vadd.f32 %v379, %v590
  %v719 = vadd.f32 %v381, %v592
  %v720 = vadd.f32 %v432, %v643
  %v721 = vadd.f32 %v434, %v645
  %v722 = vadd.f32 %v485, %v696
  %v723 = vadd.f32 %v487, %v698
  %v728 = vunpack.c.l.b16 %v32
  %v729 = vunpack.c.l.b16 %v33
  %v730 = vunpack.c.l.b16 %v34
  %v731 = vunpack.c.l.b16 %v35
  %v732 = vpack.c.b16 %v729, %v728
  %v733 = vpack.c.b16 %v731, %v730
  %734 = vrot.lane.b32.xlu0 %v75, 110
  %v735 = vpop.permute.xlu0 %734
  %736 = vrot.lane.b32.xlu0 %v83, 110
  %v737 = vpop.permute.xlu0 %736
  %738 = vrot.lane.b32.xlu0 %v82, 110
  %v739 = vpop.permute.xlu0 %738
  %740 = vrot.lane.b32.xlu0 %v84, 110
  %v741 = vpop.permute.xlu0 %740
  %742 = vrot.lane.b32.xlu0 %v91, 110
  %v743 = vpop.permute.xlu0 %742
  %744 = vrot.lane.b32.xlu0 %v92, 110
  %v745 = vpop.permute.xlu0 %744
  %vm746 = vcmask 900096
  %v747 = vsel %vm746, %v735, %v737
  %v748 = vsel %vm746, %v737, %v739
  %v749 = vsel %vm746, %v739, %v741
  %v750 = vsel %vm746, %v741, %v743
  %v751 = vsel %vm746, %v743, %v745
  %v753 = vsel %vm111, %v732, 0
  %v756 = vsel %vm111, %v733, 0
  %v759 = vsel %vm118, %v747, 0
  %v762 = vsel %vm118, %v748, 0
  %v765 = vsel %vm118, %v749, 0
  %v768 = vsel %vm118, %v750, 0
  %v771 = vsel %vm118, %v751, 0
  %v774 = vsel %vm118, %v745, 0
  %776 = vmatprep.subr.bf16.mxu0 %v762
  %777 = vmatpush1.bf16.msra.mxu0 %v759
  %778 = vmatprep.subr.bf16.mxu0 0
  %779 = vmatpush1.bf16.msra.mxu0 0
  %780 = vmatprep.subr.bf16.mxu0 0
  %781 = vmatpush1.bf16.msra.mxu0 0
  %782 = vmatprep.subr.bf16.mxu0 0
  %783 = vmatpush1.bf16.msra.mxu0 0
  %784 = vmatprep.subr.bf16.mxu0 0
  %785 = vmatpush1.bf16.msra.mxu0 0
  %786 = vmatprep.subr.bf16.mxu0 0
  %787 = vmatpush1.bf16.msra.mxu0 0
  %788 = vmatprep.subr.bf16.mxu0 0
  %789 = vmatpush1.bf16.msra.mxu0 0
  %790 = vmatprep.subr.bf16.mxu0 0
  %791 = vmatpush1.bf16.msra.mxu0 0
  %792 = vmatprep.subr.bf16.mxu0 0
  %793 = vmatpush1.bf16.msra.mxu0 0
  %794 = vmatprep.subr.bf16.mxu0 0
  %795 = vmatpush1.bf16.msra.mxu0 0
  %796 = vmatprep.subr.bf16.mxu0 0
  %797 = vmatpush1.bf16.msra.mxu0 0
  %798 = vmatprep.subr.bf16.mxu0 0
  %799 = vmatpush1.bf16.msra.mxu0 0
  %800 = vmatprep.subr.bf16.mxu0 0
  %801 = vmatpush1.bf16.msra.mxu0 0
  %802 = vmatprep.subr.bf16.mxu0 0
  %803 = vmatpush1.bf16.msra.mxu0 0
  %804 = vmatprep.subr.bf16.mxu0 0
  %805 = vmatpush1.bf16.msra.mxu0 0
  %806 = vmatprep.subr.bf16.mxu0 0
  %807 = vmatpush1.bf16.msra.mxu0 0
  %808 = vmatprep.mubr.bf16.mxu0 0
  %809 = vmatmul.mubr.bf16.gmra.mrb[0].mxu0 %v753
  %v810 = vpop.f32.mrb[0].mxu0
  %v811 = vadd.f32 0.0, %v810
  %v812 = vpop.f32.mrb[0].mxu0
  %v813 = vadd.f32 0.0, %v812
  %v814 = vpop.f32.mrb[0].mxu0
  %v815 = vadd.f32 0.0, %v814
  %v816 = vpop.f32.mrb[0].mxu0
  %v817 = vadd.f32 0.0, %v816
  %818 = vmatprep.mubr.bf16.mxu0 0
  %819 = vmatmul.mubr.bf16.gmra.mrb[0].mxu0 %v756
  %v820 = vpop.f32.mrb[0].mxu0
  %v821 = vadd.f32 0.0, %v820
  %v822 = vpop.f32.mrb[0].mxu0
  %v823 = vadd.f32 0.0, %v822
  %v824 = vpop.f32.mrb[0].mxu0
  %v825 = vadd.f32 0.0, %v824
  %v826 = vpop.f32.mrb[0].mxu0
  %v827 = vadd.f32 0.0, %v826
  %828 = vdwg.mxu0
  %829 = vmatprep.subr.bf16.mxu0 %v768
  %830 = vmatpush1.bf16.msra.mxu0 %v765
  %831 = vmatprep.subr.bf16.mxu0 0
  %832 = vmatpush1.bf16.msra.mxu0 0
  %833 = vmatprep.subr.bf16.mxu0 0
  %834 = vmatpush1.bf16.msra.mxu0 0
  %835 = vmatprep.subr.bf16.mxu0 0
  %836 = vmatpush1.bf16.msra.mxu0 0
  %837 = vmatprep.subr.bf16.mxu0 0
  %838 = vmatpush1.bf16.msra.mxu0 0
  %839 = vmatprep.subr.bf16.mxu0 0
  %840 = vmatpush1.bf16.msra.mxu0 0
  %841 = vmatprep.subr.bf16.mxu0 0
  %842 = vmatpush1.bf16.msra.mxu0 0
  %843 = vmatprep.subr.bf16.mxu0 0
  %844 = vmatpush1.bf16.msra.mxu0 0
  %845 = vmatprep.subr.bf16.mxu0 0
  %846 = vmatpush1.bf16.msra.mxu0 0
  %847 = vmatprep.subr.bf16.mxu0 0
  %848 = vmatpush1.bf16.msra.mxu0 0
  %849 = vmatprep.subr.bf16.mxu0 0
  %850 = vmatpush1.bf16.msra.mxu0 0
  %851 = vmatprep.subr.bf16.mxu0 0
  %852 = vmatpush1.bf16.msra.mxu0 0
  %853 = vmatprep.subr.bf16.mxu0 0
  %854 = vmatpush1.bf16.msra.mxu0 0
  %855 = vmatprep.subr.bf16.mxu0 0
  %856 = vmatpush1.bf16.msra.mxu0 0
  %857 = vmatprep.subr.bf16.mxu0 0
  %858 = vmatpush1.bf16.msra.mxu0 0
  %859 = vmatprep.subr.bf16.mxu0 0
  %860 = vmatpush1.bf16.msra.mxu0 0
  %861 = vmatprep.mubr.bf16.mxu0 0
  %862 = vmatmul.mubr.bf16.gmra.mrb[0].mxu0 %v753
  %v863 = vpop.f32.mrb[0].mxu0
  %v864 = vadd.f32 0.0, %v863
  %v865 = vpop.f32.mrb[0].mxu0
  %v866 = vadd.f32 0.0, %v865
  %v867 = vpop.f32.mrb[0].mxu0
  %v868 = vadd.f32 0.0, %v867
  %v869 = vpop.f32.mrb[0].mxu0
  %v870 = vadd.f32 0.0, %v869
  %871 = vmatprep.mubr.bf16.mxu0 0
  %872 = vmatmul.mubr.bf16.gmra.mrb[0].mxu0 %v756
  %v873 = vpop.f32.mrb[0].mxu0
  %v874 = vadd.f32 0.0, %v873
  %v875 = vpop.f32.mrb[0].mxu0
  %v876 = vadd.f32 0.0, %v875
  %v877 = vpop.f32.mrb[0].mxu0
  %v878 = vadd.f32 0.0, %v877
  %v879 = vpop.f32.mrb[0].mxu0
  %v880 = vadd.f32 0.0, %v879
  %881 = vdwg.mxu0
  %882 = vmatprep.subr.bf16.mxu0 %v774
  %883 = vmatpush1.bf16.msra.mxu0 %v771
  %884 = vmatprep.subr.bf16.mxu0 0
  %885 = vmatpush1.bf16.msra.mxu0 0
  %886 = vmatprep.subr.bf16.mxu0 0
  %887 = vmatpush1.bf16.msra.mxu0 0
  %888 = vmatprep.subr.bf16.mxu0 0
  %889 = vmatpush1.bf16.msra.mxu0 0
  %890 = vmatprep.subr.bf16.mxu0 0
  %891 = vmatpush1.bf16.msra.mxu0 0
  %892 = vmatprep.subr.bf16.mxu0 0
  %893 = vmatpush1.bf16.msra.mxu0 0
  %894 = vmatprep.subr.bf16.mxu0 0
  %895 = vmatpush1.bf16.msra.mxu0 0
  %896 = vmatprep.subr.bf16.mxu0 0
  %897 = vmatpush1.bf16.msra.mxu0 0
  %898 = vmatprep.subr.bf16.mxu0 0
  %899 = vmatpush1.bf16.msra.mxu0 0
  %900 = vmatprep.subr.bf16.mxu0 0
  %901 = vmatpush1.bf16.msra.mxu0 0
  %902 = vmatprep.subr.bf16.mxu0 0
  %903 = vmatpush1.bf16.msra.mxu0 0
  %904 = vmatprep.subr.bf16.mxu0 0
  %905 = vmatpush1.bf16.msra.mxu0 0
  %906 = vmatprep.subr.bf16.mxu0 0
  %907 = vmatpush1.bf16.msra.mxu0 0
  %908 = vmatprep.subr.bf16.mxu0 0
  %909 = vmatpush1.bf16.msra.mxu0 0
  %910 = vmatprep.subr.bf16.mxu0 0
  %911 = vmatpush1.bf16.msra.mxu0 0
  %912 = vmatprep.subr.bf16.mxu0 0
  %913 = vmatpush1.bf16.msra.mxu0 0
  %914 = vmatprep.mubr.bf16.mxu0 0
  %915 = vmatmul.mubr.bf16.gmra.mrb[0].mxu0 %v753
  %v916 = vpop.f32.mrb[0].mxu0
  %v917 = vadd.f32 0.0, %v916
  %v918 = vpop.f32.mrb[0].mxu0
  %v919 = vadd.f32 0.0, %v918
  %v920 = vpop.f32.mrb[0].mxu0
  %v921 = vadd.f32 0.0, %v920
  %v922 = vpop.f32.mrb[0].mxu0
  %v923 = vadd.f32 0.0, %v922
  %924 = vmatprep.mubr.bf16.mxu0 0
  %925 = vmatmul.mubr.bf16.gmra.mrb[0].mxu0 %v756
  %v926 = vpop.f32.mrb[0].mxu0
  %v927 = vadd.f32 0.0, %v926
  %v928 = vpop.f32.mrb[0].mxu0
  %v929 = vadd.f32 0.0, %v928
  %v930 = vpop.f32.mrb[0].mxu0
  %v931 = vadd.f32 0.0, %v930
  %v932 = vpop.f32.mrb[0].mxu0
  %v933 = vadd.f32 0.0, %v932
  %934 = vdwg.mxu0
  %v935 = vadd.f32 %v700, %v811
  %v936 = vadd.f32 %v701, %v813
  %v937 = vadd.f32 %v702, %v864
  %v938 = vadd.f32 %v703, %v866
  %v939 = vadd.f32 %v704, %v917
  %v940 = vadd.f32 %v705, %v919
  %v941 = vadd.f32 %v706, %v815
  %v942 = vadd.f32 %v707, %v817
  %v943 = vadd.f32 %v708, %v868
  %v944 = vadd.f32 %v709, %v870
  %v945 = vadd.f32 %v710, %v921
  %v946 = vadd.f32 %v711, %v923
  %v947 = vadd.f32 %v712, %v821
  %v948 = vadd.f32 %v713, %v823
  %v949 = vadd.f32 %v714, %v874
  %v950 = vadd.f32 %v715, %v876
  %v951 = vadd.f32 %v716, %v927
  %v952 = vadd.f32 %v717, %v929
  %v953 = vadd.f32 %v718, %v825
  %v954 = vadd.f32 %v719, %v827
  %v955 = vadd.f32 %v720, %v878
  %v956 = vadd.f32 %v721, %v880
  %v957 = vadd.f32 %v722, %v931
  %v958 = vadd.f32 %v723, %v933
  %v963 = vunpack.c.l.b16 %v36
  %v964 = vunpack.c.l.b16 %v37
  %v965 = vunpack.c.l.b16 %v38
  %v966 = vunpack.c.l.b16 %v39
  %v967 = vpack.c.b16 %v964, %v963
  %v968 = vpack.c.b16 %v966, %v965
  %969 = vrot.lane.b32.xlu0 %v75, 109
  %v970 = vpop.permute.xlu0 %969
  %971 = vrot.lane.b32.xlu0 %v83, 109
  %v972 = vpop.permute.xlu0 %971
  %973 = vrot.lane.b32.xlu0 %v82, 109
  %v974 = vpop.permute.xlu0 %973
  %975 = vrot.lane.b32.xlu0 %v84, 109
  %v976 = vpop.permute.xlu0 %975
  %977 = vrot.lane.b32.xlu0 %v91, 109
  %v978 = vpop.permute.xlu0 %977
  %979 = vrot.lane.b32.xlu0 %v92, 109
  %v980 = vpop.permute.xlu0 %979
  %vm981 = vcmask 891904
  %v982 = vsel %vm981, %v970, %v972
  %v983 = vsel %vm981, %v972, %v974
  %v984 = vsel %vm981, %v974, %v976
  %v985 = vsel %vm981, %v976, %v978
  %v986 = vsel %vm981, %v978, %v980
  %v988 = vsel %vm111, %v967, 0
  %v991 = vsel %vm111, %v968, 0
  %v994 = vsel %vm118, %v982, 0
  %v997 = vsel %vm118, %v983, 0
  %v1000 = vsel %vm118, %v984, 0
  %v1003 = vsel %vm118, %v985, 0
  %v1006 = vsel %vm118, %v986, 0
  %v1009 = vsel %vm118, %v980, 0
  %1011 = vmatprep.subr.bf16.mxu0 %v997
  %1012 = vmatpush1.bf16.msra.mxu0 %v994
  %1013 = vmatprep.subr.bf16.mxu0 0
  %1014 = vmatpush1.bf16.msra.mxu0 0
  %1015 = vmatprep.subr.bf16.mxu0 0
  %1016 = vmatpush1.bf16.msra.mxu0 0
  %1017 = vmatprep.subr.bf16.mxu0 0
  %1018 = vmatpush1.bf16.msra.mxu0 0
  %1019 = vmatprep.subr.bf16.mxu0 0
  %1020 = vmatpush1.bf16.msra.mxu0 0
  %1021 = vmatprep.subr.bf16.mxu0 0
  %1022 = vmatpush1.bf16.msra.mxu0 0
  %1023 = vmatprep.subr.bf16.mxu0 0
  %1024 = vmatpush1.bf16.msra.mxu0 0
  %1025 = vmatprep.subr.bf16.mxu0 0
  %1026 = vmatpush1.bf16.msra.mxu0 0
  %1027 = vmatprep.subr.bf16.mxu0 0
  %1028 = vmatpush1.bf16.msra.mxu0 0
  %1029 = vmatprep.subr.bf16.mxu0 0
  %1030 = vmatpush1.bf16.msra.mxu0 0
  %1031 = vmatprep.subr.bf16.mxu0 0
  %1032 = vmatpush1.bf16.msra.mxu0 0
  %1033 = vmatprep.subr.bf16.mxu0 0
  %1034 = vmatpush1.bf16.msra.mxu0 0
  %1035 = vmatprep.subr.bf16.mxu0 0
  %1036 = vmatpush1.bf16.msra.mxu0 0
  %1037 = vmatprep.subr.bf16.mxu0 0
  %1038 = vmatpush1.bf16.msra.mxu0 0
  %1039 = vmatprep.subr.bf16.mxu0 0
  %1040 = vmatpush1.bf16.msra.mxu0 0
  %1041 = vmatprep.subr.bf16.mxu0 0
  %1042 = vmatpush1.bf16.msra.mxu0 0
  %1043 = vmatprep.mubr.bf16.mxu0 0
  %1044 = vmatmul.mubr.bf16.gmra.mrb[0].mxu0 %v988
  %v1045 = vpop.f32.mrb[0].mxu0
  %v1046 = vadd.f32 0.0, %v1045
  %v1047 = vpop.f32.mrb[0].mxu0
  %v1048 = vadd.f32 0.0, %v1047
  %v1049 = vpop.f32.mrb[0].mxu0
  %v1050 = vadd.f32 0.0, %v1049
  %v1051 = vpop.f32.mrb[0].mxu0
  %v1052 = vadd.f32 0.0, %v1051
  %1053 = vmatprep.mubr.bf16.mxu0 0
  %1054 = vmatmul.mubr.bf16.gmra.mrb[0].mxu0 %v991
  %v1055 = vpop.f32.mrb[0].mxu0
  %v1056 = vadd.f32 0.0, %v1055
  %v1057 = vpop.f32.mrb[0].mxu0
  %v1058 = vadd.f32 0.0, %v1057
  %v1059 = vpop.f32.mrb[0].mxu0
  %v1060 = vadd.f32 0.0, %v1059
  %v1061 = vpop.f32.mrb[0].mxu0
  %v1062 = vadd.f32 0.0, %v1061
  %1063 = vdwg.mxu0
  %1064 = vmatprep.subr.bf16.mxu0 %v1003
  %1065 = vmatpush1.bf16.msra.mxu0 %v1000
  %1066 = vmatprep.subr.bf16.mxu0 0
  %1067 = vmatpush1.bf16.msra.mxu0 0
  %1068 = vmatprep.subr.bf16.mxu0 0
  %1069 = vmatpush1.bf16.msra.mxu0 0
  %1070 = vmatprep.subr.bf16.mxu0 0
  %1071 = vmatpush1.bf16.msra.mxu0 0
  %1072 = vmatprep.subr.bf16.mxu0 0
  %1073 = vmatpush1.bf16.msra.mxu0 0
  %1074 = vmatprep.subr.bf16.mxu0 0
  %1075 = vmatpush1.bf16.msra.mxu0 0
  %1076 = vmatprep.subr.bf16.mxu0 0
  %1077 = vmatpush1.bf16.msra.mxu0 0
  %1078 = vmatprep.subr.bf16.mxu0 0
  %1079 = vmatpush1.bf16.msra.mxu0 0
  %1080 = vmatprep.subr.bf16.mxu0 0
  %1081 = vmatpush1.bf16.msra.mxu0 0
  %1082 = vmatprep.subr.bf16.mxu0 0
  %1083 = vmatpush1.bf16.msra.mxu0 0
  %1084 = vmatprep.subr.bf16.mxu0 0
  %1085 = vmatpush1.bf16.msra.mxu0 0
  %1086 = vmatprep.subr.bf16.mxu0 0
  %1087 = vmatpush1.bf16.msra.mxu0 0
  %1088 = vmatprep.subr.bf16.mxu0 0
  %1089 = vmatpush1.bf16.msra.mxu0 0
  %1090 = vmatprep.subr.bf16.mxu0 0
  %1091 = vmatpush1.bf16.msra.mxu0 0
  %1092 = vmatprep.subr.bf16.mxu0 0
  %1093 = vmatpush1.bf16.msra.mxu0 0
  %1094 = vmatprep.subr.bf16.mxu0 0
  %1095 = vmatpush1.bf16.msra.mxu0 0
  %1096 = vmatprep.mubr.bf16.mxu0 0
  %1097 = vmatmul.mubr.bf16.gmra.mrb[0].mxu0 %v988
  %v1098 = vpop.f32.mrb[0].mxu0
  %v1099 = vadd.f32 0.0, %v1098
  %v1100 = vpop.f32.mrb[0].mxu0
  %v1101 = vadd.f32 0.0, %v1100
  %v1102 = vpop.f32.mrb[0].mxu0
  %v1103 = vadd.f32 0.0, %v1102
  %v1104 = vpop.f32.mrb[0].mxu0
  %v1105 = vadd.f32 0.0, %v1104
  %1106 = vmatprep.mubr.bf16.mxu0 0
  %1107 = vmatmul.mubr.bf16.gmra.mrb[0].mxu0 %v991
  %v1108 = vpop.f32.mrb[0].mxu0
  %v1109 = vadd.f32 0.0, %v1108
  %v1110 = vpop.f32.mrb[0].mxu0
  %v1111 = vadd.f32 0.0, %v1110
  %v1112 = vpop.f32.mrb[0].mxu0
  %v1113 = vadd.f32 0.0, %v1112
  %v1114 = vpop.f32.mrb[0].mxu0
  %v1115 = vadd.f32 0.0, %v1114
  %1116 = vdwg.mxu0
  %1117 = vmatprep.subr.bf16.mxu0 %v1009
  %1118 = vmatpush1.bf16.msra.mxu0 %v1006
  %1119 = vmatprep.subr.bf16.mxu0 0
  %1120 = vmatpush1.bf16.msra.mxu0 0
  %1121 = vmatprep.subr.bf16.mxu0 0
  %1122 = vmatpush1.bf16.msra.mxu0 0
  %1123 = vmatprep.subr.bf16.mxu0 0
  %1124 = vmatpush1.bf16.msra.mxu0 0
  %1125 = vmatprep.subr.bf16.mxu0 0
  %1126 = vmatpush1.bf16.msra.mxu0 0
  %1127 = vmatprep.subr.bf16.mxu0 0
  %1128 = vmatpush1.bf16.msra.mxu0 0
  %1129 = vmatprep.subr.bf16.mxu0 0
  %1130 = vmatpush1.bf16.msra.mxu0 0
  %1131 = vmatprep.subr.bf16.mxu0 0
  %1132 = vmatpush1.bf16.msra.mxu0 0
  %1133 = vmatprep.subr.bf16.mxu0 0
  %1134 = vmatpush1.bf16.msra.mxu0 0
  %1135 = vmatprep.subr.bf16.mxu0 0
  %1136 = vmatpush1.bf16.msra.mxu0 0
  %1137 = vmatprep.subr.bf16.mxu0 0
  %1138 = vmatpush1.bf16.msra.mxu0 0
  %1139 = vmatprep.subr.bf16.mxu0 0
  %1140 = vmatpush1.bf16.msra.mxu0 0
  %1141 = vmatprep.subr.bf16.mxu0 0
  %1142 = vmatpush1.bf16.msra.mxu0 0
  %1143 = vmatprep.subr.bf16.mxu0 0
  %1144 = vmatpush1.bf16.msra.mxu0 0
  %1145 = vmatprep.subr.bf16.mxu0 0
  %1146 = vmatpush1.bf16.msra.mxu0 0
  %1147 = vmatprep.subr.bf16.mxu0 0
  %1148 = vmatpush1.bf16.msra.mxu0 0
  %1149 = vmatprep.mubr.bf16.mxu0 0
  %1150 = vmatmul.mubr.bf16.gmra.mrb[0].mxu0 %v988
  %v1151 = vpop.f32.mrb[0].mxu0
  %v1152 = vadd.f32 0.0, %v1151
  %v1153 = vpop.f32.mrb[0].mxu0
  %v1154 = vadd.f32 0.0, %v1153
  %v1155 = vpop.f32.mrb[0].mxu0
  %v1156 = vadd.f32 0.0, %v1155
  %v1157 = vpop.f32.mrb[0].mxu0
  %v1158 = vadd.f32 0.0, %v1157
  %1159 = vmatprep.mubr.bf16.mxu0 0
  %1160 = vmatmul.mubr.bf16.gmra.mrb[0].mxu0 %v991
  %v1161 = vpop.f32.mrb[0].mxu0
  %v1162 = vadd.f32 0.0, %v1161
  %v1163 = vpop.f32.mrb[0].mxu0
  %v1164 = vadd.f32 0.0, %v1163
  %v1165 = vpop.f32.mrb[0].mxu0
  %v1166 = vadd.f32 0.0, %v1165
  %v1167 = vpop.f32.mrb[0].mxu0
  %v1168 = vadd.f32 0.0, %v1167
  %1169 = vdwg.mxu0
  %v1170 = vadd.f32 %v935, %v1046
  %v1171 = vadd.f32 %v936, %v1048
  %v1172 = vadd.f32 %v937, %v1099
  %v1173 = vadd.f32 %v938, %v1101
  %v1174 = vadd.f32 %v939, %v1152
  %v1175 = vadd.f32 %v940, %v1154
  %v1176 = vadd.f32 %v941, %v1050
  %v1177 = vadd.f32 %v942, %v1052
  %v1178 = vadd.f32 %v943, %v1103
  %v1179 = vadd.f32 %v944, %v1105
  %v1180 = vadd.f32 %v945, %v1156
  %v1181 = vadd.f32 %v946, %v1158
  %v1182 = vadd.f32 %v947, %v1056
  %v1183 = vadd.f32 %v948, %v1058
  %v1184 = vadd.f32 %v949, %v1109
  %v1185 = vadd.f32 %v950, %v1111
  %v1186 = vadd.f32 %v951, %v1162
  %v1187 = vadd.f32 %v952, %v1164
  %v1188 = vadd.f32 %v953, %v1060
  %v1189 = vadd.f32 %v954, %v1062
  %v1190 = vadd.f32 %v955, %v1113
  %v1191 = vadd.f32 %v956, %v1115
  %v1192 = vadd.f32 %v957, %v1166
  %v1193 = vadd.f32 %v958, %v1168
  %v1198 = vunpack.c.l.b16 %v40
  %v1199 = vunpack.c.l.b16 %v41
  %v1200 = vunpack.c.l.b16 %v42
  %v1201 = vunpack.c.l.b16 %v43
  %v1202 = vpack.c.b16 %v1199, %v1198
  %v1203 = vpack.c.b16 %v1201, %v1200
  %1204 = vrot.lane.b32.xlu0 %v75, 108
  %v1205 = vpop.permute.xlu0 %1204
  %1206 = vrot.lane.b32.xlu0 %v83, 108
  %v1207 = vpop.permute.xlu0 %1206
  %1208 = vrot.lane.b32.xlu0 %v82, 108
  %v1209 = vpop.permute.xlu0 %1208
  %1210 = vrot.lane.b32.xlu0 %v84, 108
  %v1211 = vpop.permute.xlu0 %1210
  %1212 = vrot.lane.b32.xlu0 %v91, 108
  %v1213 = vpop.permute.xlu0 %1212
  %1214 = vrot.lane.b32.xlu0 %v92, 108
  %v1215 = vpop.permute.xlu0 %1214
  %vm1216 = vcmask 883712
  %v1217 = vsel %vm1216, %v1205, %v1207
  %v1218 = vsel %vm1216, %v1207, %v1209
  %v1219 = vsel %vm1216, %v1209, %v1211
  %v1220 = vsel %vm1216, %v1211, %v1213
  %v1221 = vsel %vm1216, %v1213, %v1215
  %v1223 = vsel %vm111, %v1202, 0
  %v1226 = vsel %vm111, %v1203, 0
  %v1229 = vsel %vm118, %v1217, 0
  %v1232 = vsel %vm118, %v1218, 0
  %v1235 = vsel %vm118, %v1219, 0
  %v1238 = vsel %vm118, %v1220, 0
  %v1241 = vsel %vm118, %v1221, 0
  %v1244 = vsel %vm118, %v1215, 0
  %1246 = vmatprep.subr.bf16.mxu0 %v1232
  %1247 = vmatpush1.bf16.msra.mxu0 %v1229
  %1248 = vmatprep.subr.bf16.mxu0 0
  %1249 = vmatpush1.bf16.msra.mxu0 0
  %1250 = vmatprep.subr.bf16.mxu0 0
  %1251 = vmatpush1.bf16.msra.mxu0 0
  %1252 = vmatprep.subr.bf16.mxu0 0
  %1253 = vmatpush1.bf16.msra.mxu0 0
  %1254 = vmatprep.subr.bf16.mxu0 0
  %1255 = vmatpush1.bf16.msra.mxu0 0
  %1256 = vmatprep.subr.bf16.mxu0 0
  %1257 = vmatpush1.bf16.msra.mxu0 0
  %1258 = vmatprep.subr.bf16.mxu0 0
  %1259 = vmatpush1.bf16.msra.mxu0 0
  %1260 = vmatprep.subr.bf16.mxu0 0
  %1261 = vmatpush1.bf16.msra.mxu0 0
  %1262 = vmatprep.subr.bf16.mxu0 0
  %1263 = vmatpush1.bf16.msra.mxu0 0
  %1264 = vmatprep.subr.bf16.mxu0 0
  %1265 = vmatpush1.bf16.msra.mxu0 0
  %1266 = vmatprep.subr.bf16.mxu0 0
  %1267 = vmatpush1.bf16.msra.mxu0 0
  %1268 = vmatprep.subr.bf16.mxu0 0
  %1269 = vmatpush1.bf16.msra.mxu0 0
  %1270 = vmatprep.subr.bf16.mxu0 0
  %1271 = vmatpush1.bf16.msra.mxu0 0
  %1272 = vmatprep.subr.bf16.mxu0 0
  %1273 = vmatpush1.bf16.msra.mxu0 0
  %1274 = vmatprep.subr.bf16.mxu0 0
  %1275 = vmatpush1.bf16.msra.mxu0 0
  %1276 = vmatprep.subr.bf16.mxu0 0
  %1277 = vmatpush1.bf16.msra.mxu0 0
  %1278 = vmatprep.mubr.bf16.mxu0 0
  %1279 = vmatmul.mubr.bf16.gmra.mrb[0].mxu0 %v1223
  %v1280 = vpop.f32.mrb[0].mxu0
  %v1281 = vadd.f32 0.0, %v1280
  %v1282 = vpop.f32.mrb[0].mxu0
  %v1283 = vadd.f32 0.0, %v1282
  %v1284 = vpop.f32.mrb[0].mxu0
  %v1285 = vadd.f32 0.0, %v1284
  %v1286 = vpop.f32.mrb[0].mxu0
  %v1287 = vadd.f32 0.0, %v1286
  %1288 = vmatprep.mubr.bf16.mxu0 0
  %1289 = vmatmul.mubr.bf16.gmra.mrb[0].mxu0 %v1226
  %v1290 = vpop.f32.mrb[0].mxu0
  %v1291 = vadd.f32 0.0, %v1290
  %v1292 = vpop.f32.mrb[0].mxu0
  %v1293 = vadd.f32 0.0, %v1292
  %v1294 = vpop.f32.mrb[0].mxu0
  %v1295 = vadd.f32 0.0, %v1294
  %v1296 = vpop.f32.mrb[0].mxu0
  %v1297 = vadd.f32 0.0, %v1296
  %1298 = vdwg.mxu0
  %1299 = vmatprep.subr.bf16.mxu0 %v1238
  %1300 = vmatpush1.bf16.msra.mxu0 %v1235
  %1301 = vmatprep.subr.bf16.mxu0 0
  %1302 = vmatpush1.bf16.msra.mxu0 0
  %1303 = vmatprep.subr.bf16.mxu0 0
  %1304 = vmatpush1.bf16.msra.mxu0 0
  %1305 = vmatprep.subr.bf16.mxu0 0
  %1306 = vmatpush1.bf16.msra.mxu0 0
  %1307 = vmatprep.subr.bf16.mxu0 0
  %1308 = vmatpush1.bf16.msra.mxu0 0
  %1309 = vmatprep.subr.bf16.mxu0 0
  %1310 = vmatpush1.bf16.msra.mxu0 0
  %1311 = vmatprep.subr.bf16.mxu0 0
  %1312 = vmatpush1.bf16.msra.mxu0 0
  %1313 = vmatprep.subr.bf16.mxu0 0
  %1314 = vmatpush1.bf16.msra.mxu0 0
  %1315 = vmatprep.subr.bf16.mxu0 0
  %1316 = vmatpush1.bf16.msra.mxu0 0
  %1317 = vmatprep.subr.bf16.mxu0 0
  %1318 = vmatpush1.bf16.msra.mxu0 0
  %1319 = vmatprep.subr.bf16.mxu0 0
  %1320 = vmatpush1.bf16.msra.mxu0 0
  %1321 = vmatprep.subr.bf16.mxu0 0
  %1322 = vmatpush1.bf16.msra.mxu0 0
  %1323 = vmatprep.subr.bf16.mxu0 0
  %1324 = vmatpush1.bf16.msra.mxu0 0
  %1325 = vmatprep.subr.bf16.mxu0 0
  %1326 = vmatpush1.bf16.msra.mxu0 0
  %1327 = vmatprep.subr.bf16.mxu0 0
  %1328 = vmatpush1.bf16.msra.mxu0 0
  %1329 = vmatprep.subr.bf16.mxu0 0
  %1330 = vmatpush1.bf16.msra.mxu0 0
  %1331 = vmatprep.mubr.bf16.mxu0 0
  %1332 = vmatmul.mubr.bf16.gmra.mrb[0].mxu0 %v1223
  %v1333 = vpop.f32.mrb[0].mxu0
  %v1334 = vadd.f32 0.0, %v1333
  %v1335 = vpop.f32.mrb[0].mxu0
  %v1336 = vadd.f32 0.0, %v1335
  %v1337 = vpop.f32.mrb[0].mxu0
  %v1338 = vadd.f32 0.0, %v1337
  %v1339 = vpop.f32.mrb[0].mxu0
  %v1340 = vadd.f32 0.0, %v1339
  %1341 = vmatprep.mubr.bf16.mxu0 0
  %1342 = vmatmul.mubr.bf16.gmra.mrb[0].mxu0 %v1226
  %v1343 = vpop.f32.mrb[0].mxu0
  %v1344 = vadd.f32 0.0, %v1343
  %v1345 = vpop.f32.mrb[0].mxu0
  %v1346 = vadd.f32 0.0, %v1345
  %v1347 = vpop.f32.mrb[0].mxu0
  %v1348 = vadd.f32 0.0, %v1347
  %v1349 = vpop.f32.mrb[0].mxu0
  %v1350 = vadd.f32 0.0, %v1349
  %1351 = vdwg.mxu0
  %1352 = vmatprep.subr.bf16.mxu0 %v1244
  %1353 = vmatpush1.bf16.msra.mxu0 %v1241
  %1354 = vmatprep.subr.bf16.mxu0 0
  %1355 = vmatpush1.bf16.msra.mxu0 0
  %1356 = vmatprep.subr.bf16.mxu0 0
  %1357 = vmatpush1.bf16.msra.mxu0 0
  %1358 = vmatprep.subr.bf16.mxu0 0
  %1359 = vmatpush1.bf16.msra.mxu0 0
  %1360 = vmatprep.subr.bf16.mxu0 0
  %1361 = vmatpush1.bf16.msra.mxu0 0
  %1362 = vmatprep.subr.bf16.mxu0 0
  %1363 = vmatpush1.bf16.msra.mxu0 0
  %1364 = vmatprep.subr.bf16.mxu0 0
  %1365 = vmatpush1.bf16.msra.mxu0 0
  %1366 = vmatprep.subr.bf16.mxu0 0
  %1367 = vmatpush1.bf16.msra.mxu0 0
  %1368 = vmatprep.subr.bf16.mxu0 0
  %1369 = vmatpush1.bf16.msra.mxu0 0
  %1370 = vmatprep.subr.bf16.mxu0 0
  %1371 = vmatpush1.bf16.msra.mxu0 0
  %1372 = vmatprep.subr.bf16.mxu0 0
  %1373 = vmatpush1.bf16.msra.mxu0 0
  %1374 = vmatprep.subr.bf16.mxu0 0
  %1375 = vmatpush1.bf16.msra.mxu0 0
  %1376 = vmatprep.subr.bf16.mxu0 0
  %1377 = vmatpush1.bf16.msra.mxu0 0
  %1378 = vmatprep.subr.bf16.mxu0 0
  %1379 = vmatpush1.bf16.msra.mxu0 0
  %1380 = vmatprep.subr.bf16.mxu0 0
  %1381 = vmatpush1.bf16.msra.mxu0 0
  %1382 = vmatprep.subr.bf16.mxu0 0
  %1383 = vmatpush1.bf16.msra.mxu0 0
  %1384 = vmatprep.mubr.bf16.mxu0 0
  %1385 = vmatmul.mubr.bf16.gmra.mrb[0].mxu0 %v1223
  %v1386 = vpop.f32.mrb[0].mxu0
  %v1387 = vadd.f32 0.0, %v1386
  %v1388 = vpop.f32.mrb[0].mxu0
  %v1389 = vadd.f32 0.0, %v1388
  %v1390 = vpop.f32.mrb[0].mxu0
  %v1391 = vadd.f32 0.0, %v1390
  %v1392 = vpop.f32.mrb[0].mxu0
  %v1393 = vadd.f32 0.0, %v1392
  %1394 = vmatprep.mubr.bf16.mxu0 0
  %1395 = vmatmul.mubr.bf16.gmra.mrb[0].mxu0 %v1226
  %v1396 = vpop.f32.mrb[0].mxu0
  %v1397 = vadd.f32 0.0, %v1396
  %v1398 = vpop.f32.mrb[0].mxu0
  %v1399 = vadd.f32 0.0, %v1398
  %v1400 = vpop.f32.mrb[0].mxu0
  %v1401 = vadd.f32 0.0, %v1400
  %v1402 = vpop.f32.mrb[0].mxu0
  %v1403 = vadd.f32 0.0, %v1402
  %1404 = vdwg.mxu0
  %v1405 = vadd.f32 %v1170, %v1281
  %v1406 = vadd.f32 %v1171, %v1283
  %v1407 = vadd.f32 %v1172, %v1334
  %v1408 = vadd.f32 %v1173, %v1336
  %v1409 = vadd.f32 %v1174, %v1387
  %v1410 = vadd.f32 %v1175, %v1389
  %v1411 = vadd.f32 %v1176, %v1285
  %v1412 = vadd.f32 %v1177, %v1287
  %v1413 = vadd.f32 %v1178, %v1338
  %v1414 = vadd.f32 %v1179, %v1340
  %v1415 = vadd.f32 %v1180, %v1391
  %v1416 = vadd.f32 %v1181, %v1393
  %v1417 = vadd.f32 %v1182, %v1291
  %v1418 = vadd.f32 %v1183, %v1293
  %v1419 = vadd.f32 %v1184, %v1344
  %v1420 = vadd.f32 %v1185, %v1346
  %v1421 = vadd.f32 %v1186, %v1397
  %v1422 = vadd.f32 %v1187, %v1399
  %v1423 = vadd.f32 %v1188, %v1295
  %v1424 = vadd.f32 %v1189, %v1297
  %v1425 = vadd.f32 %v1190, %v1348
  %v1426 = vadd.f32 %v1191, %v1350
  %v1427 = vadd.f32 %v1192, %v1401
  %v1428 = vadd.f32 %v1193, %v1403
  %v1433 = vunpack.c.l.b16 %v44
  %v1434 = vunpack.c.l.b16 %v45
  %v1435 = vunpack.c.l.b16 %v46
  %v1436 = vunpack.c.l.b16 %v47
  %v1437 = vpack.c.b16 %v1434, %v1433
  %v1438 = vpack.c.b16 %v1436, %v1435
  %1439 = vrot.lane.b32.xlu0 %v75, 92
  %v1440 = vpop.permute.xlu0 %1439
  %1441 = vrot.lane.b32.xlu0 %v83, 92
  %v1442 = vpop.permute.xlu0 %1441
  %1443 = vrot.lane.b32.xlu0 %v82, 92
  %v1444 = vpop.permute.xlu0 %1443
  %1445 = vrot.lane.b32.xlu0 %v84, 92
  %v1446 = vpop.permute.xlu0 %1445
  %1447 = vrot.lane.b32.xlu0 %v91, 92
  %v1448 = vpop.permute.xlu0 %1447
  %1449 = vrot.lane.b32.xlu0 %v92, 92
  %v1450 = vpop.permute.xlu0 %1449
  %vm1451 = vcmask 752640
  %v1452 = vsel %vm1451, %v1440, %v1442
  %v1453 = vsel %vm1451, %v1442, %v1444
  %v1454 = vsel %vm1451, %v1444, %v1446
  %v1455 = vsel %vm1451, %v1446, %v1448
  %v1456 = vsel %vm1451, %v1448, %v1450
  %v1458 = vsel %vm111, %v1437, 0
  %v1461 = vsel %vm111, %v1438, 0
  %v1464 = vsel %vm118, %v1452, 0
  %v1467 = vsel %vm118, %v1453, 0
  %v1470 = vsel %vm118, %v1454, 0
  %v1473 = vsel %vm118, %v1455, 0
  %v1476 = vsel %vm118, %v1456, 0
  %v1479 = vsel %vm118, %v1450, 0
  %1481 = vmatprep.subr.bf16.mxu0 %v1467
  %1482 = vmatpush1.bf16.msra.mxu0 %v1464
  %1483 = vmatprep.subr.bf16.mxu0 0
  %1484 = vmatpush1.bf16.msra.mxu0 0
  %1485 = vmatprep.subr.bf16.mxu0 0
  %1486 = vmatpush1.bf16.msra.mxu0 0
  %1487 = vmatprep.subr.bf16.mxu0 0
  %1488 = vmatpush1.bf16.msra.mxu0 0
  %1489 = vmatprep.subr.bf16.mxu0 0
  %1490 = vmatpush1.bf16.msra.mxu0 0
  %1491 = vmatprep.subr.bf16.mxu0 0
  %1492 = vmatpush1.bf16.msra.mxu0 0
  %1493 = vmatprep.subr.bf16.mxu0 0
  %1494 = vmatpush1.bf16.msra.mxu0 0
  %1495 = vmatprep.subr.bf16.mxu0 0
  %1496 = vmatpush1.bf16.msra.mxu0 0
  %1497 = vmatprep.subr.bf16.mxu0 0
  %1498 = vmatpush1.bf16.msra.mxu0 0
  %1499 = vmatprep.subr.bf16.mxu0 0
  %1500 = vmatpush1.bf16.msra.mxu0 0
  %1501 = vmatprep.subr.bf16.mxu0 0
  %1502 = vmatpush1.bf16.msra.mxu0 0
  %1503 = vmatprep.subr.bf16.mxu0 0
  %1504 = vmatpush1.bf16.msra.mxu0 0
  %1505 = vmatprep.subr.bf16.mxu0 0
  %1506 = vmatpush1.bf16.msra.mxu0 0
  %1507 = vmatprep.subr.bf16.mxu0 0
  %1508 = vmatpush1.bf16.msra.mxu0 0
  %1509 = vmatprep.subr.bf16.mxu0 0
  %1510 = vmatpush1.bf16.msra.mxu0 0
  %1511 = vmatprep.subr.bf16.mxu0 0
  %1512 = vmatpush1.bf16.msra.mxu0 0
  %1513 = vmatprep.mubr.bf16.mxu0 0
  %1514 = vmatmul.mubr.bf16.gmra.mrb[0].mxu0 %v1458
  %v1515 = vpop.f32.mrb[0].mxu0
  %v1516 = vadd.f32 0.0, %v1515
  %v1517 = vpop.f32.mrb[0].mxu0
  %v1518 = vadd.f32 0.0, %v1517
  %v1519 = vpop.f32.mrb[0].mxu0
  %v1520 = vadd.f32 0.0, %v1519
  %v1521 = vpop.f32.mrb[0].mxu0
  %v1522 = vadd.f32 0.0, %v1521
  %1523 = vmatprep.mubr.bf16.mxu0 0
  %1524 = vmatmul.mubr.bf16.gmra.mrb[0].mxu0 %v1461
  %v1525 = vpop.f32.mrb[0].mxu0
  %v1526 = vadd.f32 0.0, %v1525
  %v1527 = vpop.f32.mrb[0].mxu0
  %v1528 = vadd.f32 0.0, %v1527
  %v1529 = vpop.f32.mrb[0].mxu0
  %v1530 = vadd.f32 0.0, %v1529
  %v1531 = vpop.f32.mrb[0].mxu0
  %v1532 = vadd.f32 0.0, %v1531
  %1533 = vdwg.mxu0
  %1534 = vmatprep.subr.bf16.mxu0 %v1473
  %1535 = vmatpush1.bf16.msra.mxu0 %v1470
  %1536 = vmatprep.subr.bf16.mxu0 0
  %1537 = vmatpush1.bf16.msra.mxu0 0
  %1538 = vmatprep.subr.bf16.mxu0 0
  %1539 = vmatpush1.bf16.msra.mxu0 0
  %1540 = vmatprep.subr.bf16.mxu0 0
  %1541 = vmatpush1.bf16.msra.mxu0 0
  %1542 = vmatprep.subr.bf16.mxu0 0
  %1543 = vmatpush1.bf16.msra.mxu0 0
  %1544 = vmatprep.subr.bf16.mxu0 0
  %1545 = vmatpush1.bf16.msra.mxu0 0
  %1546 = vmatprep.subr.bf16.mxu0 0
  %1547 = vmatpush1.bf16.msra.mxu0 0
  %1548 = vmatprep.subr.bf16.mxu0 0
  %1549 = vmatpush1.bf16.msra.mxu0 0
  %1550 = vmatprep.subr.bf16.mxu0 0
  %1551 = vmatpush1.bf16.msra.mxu0 0
  %1552 = vmatprep.subr.bf16.mxu0 0
  %1553 = vmatpush1.bf16.msra.mxu0 0
  %1554 = vmatprep.subr.bf16.mxu0 0
  %1555 = vmatpush1.bf16.msra.mxu0 0
  %1556 = vmatprep.subr.bf16.mxu0 0
  %1557 = vmatpush1.bf16.msra.mxu0 0
  %1558 = vmatprep.subr.bf16.mxu0 0
  %1559 = vmatpush1.bf16.msra.mxu0 0
  %1560 = vmatprep.subr.bf16.mxu0 0
  %1561 = vmatpush1.bf16.msra.mxu0 0
  %1562 = vmatprep.subr.bf16.mxu0 0
  %1563 = vmatpush1.bf16.msra.mxu0 0
  %1564 = vmatprep.subr.bf16.mxu0 0
  %1565 = vmatpush1.bf16.msra.mxu0 0
  %1566 = vmatprep.mubr.bf16.mxu0 0
  %1567 = vmatmul.mubr.bf16.gmra.mrb[0].mxu0 %v1458
  %v1568 = vpop.f32.mrb[0].mxu0
  %v1569 = vadd.f32 0.0, %v1568
  %v1570 = vpop.f32.mrb[0].mxu0
  %v1571 = vadd.f32 0.0, %v1570
  %v1572 = vpop.f32.mrb[0].mxu0
  %v1573 = vadd.f32 0.0, %v1572
  %v1574 = vpop.f32.mrb[0].mxu0
  %v1575 = vadd.f32 0.0, %v1574
  %1576 = vmatprep.mubr.bf16.mxu0 0
  %1577 = vmatmul.mubr.bf16.gmra.mrb[0].mxu0 %v1461
  %v1578 = vpop.f32.mrb[0].mxu0
  %v1579 = vadd.f32 0.0, %v1578
  %v1580 = vpop.f32.mrb[0].mxu0
  %v1581 = vadd.f32 0.0, %v1580
  %v1582 = vpop.f32.mrb[0].mxu0
  %v1583 = vadd.f32 0.0, %v1582
  %v1584 = vpop.f32.mrb[0].mxu0
  %v1585 = vadd.f32 0.0, %v1584
  %1586 = vdwg.mxu0
  %1587 = vmatprep.subr.bf16.mxu0 %v1479
  %1588 = vmatpush1.bf16.msra.mxu0 %v1476
  %1589 = vmatprep.subr.bf16.mxu0 0
  %1590 = vmatpush1.bf16.msra.mxu0 0
  %1591 = vmatprep.subr.bf16.mxu0 0
  %1592 = vmatpush1.bf16.msra.mxu0 0
  %1593 = vmatprep.subr.bf16.mxu0 0
  %1594 = vmatpush1.bf16.msra.mxu0 0
  %1595 = vmatprep.subr.bf16.mxu0 0
  %1596 = vmatpush1.bf16.msra.mxu0 0
  %1597 = vmatprep.subr.bf16.mxu0 0
  %1598 = vmatpush1.bf16.msra.mxu0 0
  %1599 = vmatprep.subr.bf16.mxu0 0
  %1600 = vmatpush1.bf16.msra.mxu0 0
  %1601 = vmatprep.subr.bf16.mxu0 0
  %1602 = vmatpush1.bf16.msra.mxu0 0
  %1603 = vmatprep.subr.bf16.mxu0 0
  %1604 = vmatpush1.bf16.msra.mxu0 0
  %1605 = vmatprep.subr.bf16.mxu0 0
  %1606 = vmatpush1.bf16.msra.mxu0 0
  %1607 = vmatprep.subr.bf16.mxu0 0
  %1608 = vmatpush1.bf16.msra.mxu0 0
  %1609 = vmatprep.subr.bf16.mxu0 0
  %1610 = vmatpush1.bf16.msra.mxu0 0
  %1611 = vmatprep.subr.bf16.mxu0 0
  %1612 = vmatpush1.bf16.msra.mxu0 0
  %1613 = vmatprep.subr.bf16.mxu0 0
  %1614 = vmatpush1.bf16.msra.mxu0 0
  %1615 = vmatprep.subr.bf16.mxu0 0
  %1616 = vmatpush1.bf16.msra.mxu0 0
  %1617 = vmatprep.subr.bf16.mxu0 0
  %1618 = vmatpush1.bf16.msra.mxu0 0
  %1619 = vmatprep.mubr.bf16.mxu0 0
  %1620 = vmatmul.mubr.bf16.gmra.mrb[0].mxu0 %v1458
  %v1621 = vpop.f32.mrb[0].mxu0
  %v1622 = vadd.f32 0.0, %v1621
  %v1623 = vpop.f32.mrb[0].mxu0
  %v1624 = vadd.f32 0.0, %v1623
  %v1625 = vpop.f32.mrb[0].mxu0
  %v1626 = vadd.f32 0.0, %v1625
  %v1627 = vpop.f32.mrb[0].mxu0
  %v1628 = vadd.f32 0.0, %v1627
  %1629 = vmatprep.mubr.bf16.mxu0 0
  %1630 = vmatmul.mubr.bf16.gmra.mrb[0].mxu0 %v1461
  %v1631 = vpop.f32.mrb[0].mxu0
  %v1632 = vadd.f32 0.0, %v1631
  %v1633 = vpop.f32.mrb[0].mxu0
  %v1634 = vadd.f32 0.0, %v1633
  %v1635 = vpop.f32.mrb[0].mxu0
  %v1636 = vadd.f32 0.0, %v1635
  %v1637 = vpop.f32.mrb[0].mxu0
  %v1638 = vadd.f32 0.0, %v1637
  %1639 = vdwg.mxu0
  %v1640 = vadd.f32 %v1405, %v1516
  %v1641 = vadd.f32 %v1406, %v1518
  %v1642 = vadd.f32 %v1407, %v1569
  %v1643 = vadd.f32 %v1408, %v1571
  %v1644 = vadd.f32 %v1409, %v1622
  %v1645 = vadd.f32 %v1410, %v1624
  %v1646 = vadd.f32 %v1411, %v1520
  %v1647 = vadd.f32 %v1412, %v1522
  %v1648 = vadd.f32 %v1413, %v1573
  %v1649 = vadd.f32 %v1414, %v1575
  %v1650 = vadd.f32 %v1415, %v1626
  %v1651 = vadd.f32 %v1416, %v1628
  %v1652 = vadd.f32 %v1417, %v1526
  %v1653 = vadd.f32 %v1418, %v1528
  %v1654 = vadd.f32 %v1419, %v1579
  %v1655 = vadd.f32 %v1420, %v1581
  %v1656 = vadd.f32 %v1421, %v1632
  %v1657 = vadd.f32 %v1422, %v1634
  %v1658 = vadd.f32 %v1423, %v1530
  %v1659 = vadd.f32 %v1424, %v1532
  %v1660 = vadd.f32 %v1425, %v1583
  %v1661 = vadd.f32 %v1426, %v1585
  %v1662 = vadd.f32 %v1427, %v1636
  %v1663 = vadd.f32 %v1428, %v1638
  %v1668 = vunpack.c.l.b16 %v48
  %v1669 = vunpack.c.l.b16 %v49
  %v1670 = vunpack.c.l.b16 %v50
  %v1671 = vunpack.c.l.b16 %v51
  %v1672 = vpack.c.b16 %v1669, %v1668
  %v1673 = vpack.c.b16 %v1671, %v1670
  %1674 = vrot.lane.b32.xlu0 %v75, 91
  %v1675 = vpop.permute.xlu0 %1674
  %1676 = vrot.lane.b32.xlu0 %v83, 91
  %v1677 = vpop.permute.xlu0 %1676
  %1678 = vrot.lane.b32.xlu0 %v82, 91
  %v1679 = vpop.permute.xlu0 %1678
  %1680 = vrot.lane.b32.xlu0 %v84, 91
  %v1681 = vpop.permute.xlu0 %1680
  %1682 = vrot.lane.b32.xlu0 %v91, 91
  %v1683 = vpop.permute.xlu0 %1682
  %1684 = vrot.lane.b32.xlu0 %v92, 91
  %v1685 = vpop.permute.xlu0 %1684
  %vm1686 = vcmask 744448
  %v1687 = vsel %vm1686, %v1675, %v1677
  %v1688 = vsel %vm1686, %v1677, %v1679
  %v1689 = vsel %vm1686, %v1679, %v1681
  %v1690 = vsel %vm1686, %v1681, %v1683
  %v1691 = vsel %vm1686, %v1683, %v1685
  %v1693 = vsel %vm111, %v1672, 0
  %v1696 = vsel %vm111, %v1673, 0
  %v1699 = vsel %vm118, %v1687, 0
  %v1702 = vsel %vm118, %v1688, 0
  %v1705 = vsel %vm118, %v1689, 0
  %v1708 = vsel %vm118, %v1690, 0
  %v1711 = vsel %vm118, %v1691, 0
  %v1714 = vsel %vm118, %v1685, 0
  %1716 = vmatprep.subr.bf16.mxu0 %v1702
  %1717 = vmatpush1.bf16.msra.mxu0 %v1699
  %1718 = vmatprep.subr.bf16.mxu0 0
  %1719 = vmatpush1.bf16.msra.mxu0 0
  %1720 = vmatprep.subr.bf16.mxu0 0
  %1721 = vmatpush1.bf16.msra.mxu0 0
  %1722 = vmatprep.subr.bf16.mxu0 0
  %1723 = vmatpush1.bf16.msra.mxu0 0
  %1724 = vmatprep.subr.bf16.mxu0 0
  %1725 = vmatpush1.bf16.msra.mxu0 0
  %1726 = vmatprep.subr.bf16.mxu0 0
  %1727 = vmatpush1.bf16.msra.mxu0 0
  %1728 = vmatprep.subr.bf16.mxu0 0
  %1729 = vmatpush1.bf16.msra.mxu0 0
  %1730 = vmatprep.subr.bf16.mxu0 0
  %1731 = vmatpush1.bf16.msra.mxu0 0
  %1732 = vmatprep.subr.bf16.mxu0 0
  %1733 = vmatpush1.bf16.msra.mxu0 0
  %1734 = vmatprep.subr.bf16.mxu0 0
  %1735 = vmatpush1.bf16.msra.mxu0 0
  %1736 = vmatprep.subr.bf16.mxu0 0
  %1737 = vmatpush1.bf16.msra.mxu0 0
  %1738 = vmatprep.subr.bf16.mxu0 0
  %1739 = vmatpush1.bf16.msra.mxu0 0
  %1740 = vmatprep.subr.bf16.mxu0 0
  %1741 = vmatpush1.bf16.msra.mxu0 0
  %1742 = vmatprep.subr.bf16.mxu0 0
  %1743 = vmatpush1.bf16.msra.mxu0 0
  %1744 = vmatprep.subr.bf16.mxu0 0
  %1745 = vmatpush1.bf16.msra.mxu0 0
  %1746 = vmatprep.subr.bf16.mxu0 0
  %1747 = vmatpush1.bf16.msra.mxu0 0
  %1748 = vmatprep.mubr.bf16.mxu0 0
  %1749 = vmatmul.mubr.bf16.gmra.mrb[0].mxu0 %v1693
  %v1750 = vpop.f32.mrb[0].mxu0
  %v1751 = vadd.f32 0.0, %v1750
  %v1752 = vpop.f32.mrb[0].mxu0
  %v1753 = vadd.f32 0.0, %v1752
  %v1754 = vpop.f32.mrb[0].mxu0
  %v1755 = vadd.f32 0.0, %v1754
  %v1756 = vpop.f32.mrb[0].mxu0
  %v1757 = vadd.f32 0.0, %v1756
  %1758 = vmatprep.mubr.bf16.mxu0 0
  %1759 = vmatmul.mubr.bf16.gmra.mrb[0].mxu0 %v1696
  %v1760 = vpop.f32.mrb[0].mxu0
  %v1761 = vadd.f32 0.0, %v1760
  %v1762 = vpop.f32.mrb[0].mxu0
  %v1763 = vadd.f32 0.0, %v1762
  %v1764 = vpop.f32.mrb[0].mxu0
  %v1765 = vadd.f32 0.0, %v1764
  %v1766 = vpop.f32.mrb[0].mxu0
  %v1767 = vadd.f32 0.0, %v1766
  %1768 = vdwg.mxu0
  %1769 = vmatprep.subr.bf16.mxu0 %v1708
  %1770 = vmatpush1.bf16.msra.mxu0 %v1705
  %1771 = vmatprep.subr.bf16.mxu0 0
  %1772 = vmatpush1.bf16.msra.mxu0 0
  %1773 = vmatprep.subr.bf16.mxu0 0
  %1774 = vmatpush1.bf16.msra.mxu0 0
  %1775 = vmatprep.subr.bf16.mxu0 0
  %1776 = vmatpush1.bf16.msra.mxu0 0
  %1777 = vmatprep.subr.bf16.mxu0 0
  %1778 = vmatpush1.bf16.msra.mxu0 0
  %1779 = vmatprep.subr.bf16.mxu0 0
  %1780 = vmatpush1.bf16.msra.mxu0 0
  %1781 = vmatprep.subr.bf16.mxu0 0
  %1782 = vmatpush1.bf16.msra.mxu0 0
  %1783 = vmatprep.subr.bf16.mxu0 0
  %1784 = vmatpush1.bf16.msra.mxu0 0
  %1785 = vmatprep.subr.bf16.mxu0 0
  %1786 = vmatpush1.bf16.msra.mxu0 0
  %1787 = vmatprep.subr.bf16.mxu0 0
  %1788 = vmatpush1.bf16.msra.mxu0 0
  %1789 = vmatprep.subr.bf16.mxu0 0
  %1790 = vmatpush1.bf16.msra.mxu0 0
  %1791 = vmatprep.subr.bf16.mxu0 0
  %1792 = vmatpush1.bf16.msra.mxu0 0
  %1793 = vmatprep.subr.bf16.mxu0 0
  %1794 = vmatpush1.bf16.msra.mxu0 0
  %1795 = vmatprep.subr.bf16.mxu0 0
  %1796 = vmatpush1.bf16.msra.mxu0 0
  %1797 = vmatprep.subr.bf16.mxu0 0
  %1798 = vmatpush1.bf16.msra.mxu0 0
  %1799 = vmatprep.subr.bf16.mxu0 0
  %1800 = vmatpush1.bf16.msra.mxu0 0
  %1801 = vmatprep.mubr.bf16.mxu0 0
  %1802 = vmatmul.mubr.bf16.gmra.mrb[0].mxu0 %v1693
  %v1803 = vpop.f32.mrb[0].mxu0
  %v1804 = vadd.f32 0.0, %v1803
  %v1805 = vpop.f32.mrb[0].mxu0
  %v1806 = vadd.f32 0.0, %v1805
  %v1807 = vpop.f32.mrb[0].mxu0
  %v1808 = vadd.f32 0.0, %v1807
  %v1809 = vpop.f32.mrb[0].mxu0
  %v1810 = vadd.f32 0.0, %v1809
  %1811 = vmatprep.mubr.bf16.mxu0 0
  %1812 = vmatmul.mubr.bf16.gmra.mrb[0].mxu0 %v1696
  %v1813 = vpop.f32.mrb[0].mxu0
  %v1814 = vadd.f32 0.0, %v1813
  %v1815 = vpop.f32.mrb[0].mxu0
  %v1816 = vadd.f32 0.0, %v1815
  %v1817 = vpop.f32.mrb[0].mxu0
  %v1818 = vadd.f32 0.0, %v1817
  %v1819 = vpop.f32.mrb[0].mxu0
  %v1820 = vadd.f32 0.0, %v1819
  %1821 = vdwg.mxu0
  %1822 = vmatprep.subr.bf16.mxu0 %v1714
  %1823 = vmatpush1.bf16.msra.mxu0 %v1711
  %1824 = vmatprep.subr.bf16.mxu0 0
  %1825 = vmatpush1.bf16.msra.mxu0 0
  %1826 = vmatprep.subr.bf16.mxu0 0
  %1827 = vmatpush1.bf16.msra.mxu0 0
  %1828 = vmatprep.subr.bf16.mxu0 0
  %1829 = vmatpush1.bf16.msra.mxu0 0
  %1830 = vmatprep.subr.bf16.mxu0 0
  %1831 = vmatpush1.bf16.msra.mxu0 0
  %1832 = vmatprep.subr.bf16.mxu0 0
  %1833 = vmatpush1.bf16.msra.mxu0 0
  %1834 = vmatprep.subr.bf16.mxu0 0
  %1835 = vmatpush1.bf16.msra.mxu0 0
  %1836 = vmatprep.subr.bf16.mxu0 0
  %1837 = vmatpush1.bf16.msra.mxu0 0
  %1838 = vmatprep.subr.bf16.mxu0 0
  %1839 = vmatpush1.bf16.msra.mxu0 0
  %1840 = vmatprep.subr.bf16.mxu0 0
  %1841 = vmatpush1.bf16.msra.mxu0 0
  %1842 = vmatprep.subr.bf16.mxu0 0
  %1843 = vmatpush1.bf16.msra.mxu0 0
  %1844 = vmatprep.subr.bf16.mxu0 0
  %1845 = vmatpush1.bf16.msra.mxu0 0
  %1846 = vmatprep.subr.bf16.mxu0 0
  %1847 = vmatpush1.bf16.msra.mxu0 0
  %1848 = vmatprep.subr.bf16.mxu0 0
  %1849 = vmatpush1.bf16.msra.mxu0 0
  %1850 = vmatprep.subr.bf16.mxu0 0
  %1851 = vmatpush1.bf16.msra.mxu0 0
  %1852 = vmatprep.subr.bf16.mxu0 0
  %1853 = vmatpush1.bf16.msra.mxu0 0
  %1854 = vmatprep.mubr.bf16.mxu0 0
  %1855 = vmatmul.mubr.bf16.gmra.mrb[0].mxu0 %v1693
  %v1856 = vpop.f32.mrb[0].mxu0
  %v1857 = vadd.f32 0.0, %v1856
  %v1858 = vpop.f32.mrb[0].mxu0
  %v1859 = vadd.f32 0.0, %v1858
  %v1860 = vpop.f32.mrb[0].mxu0
  %v1861 = vadd.f32 0.0, %v1860
  %v1862 = vpop.f32.mrb[0].mxu0
  %v1863 = vadd.f32 0.0, %v1862
  %1864 = vmatprep.mubr.bf16.mxu0 0
  %1865 = vmatmul.mubr.bf16.gmra.mrb[0].mxu0 %v1696
  %v1866 = vpop.f32.mrb[0].mxu0
  %v1867 = vadd.f32 0.0, %v1866
  %v1868 = vpop.f32.mrb[0].mxu0
  %v1869 = vadd.f32 0.0, %v1868
  %v1870 = vpop.f32.mrb[0].mxu0
  %v1871 = vadd.f32 0.0, %v1870
  %v1872 = vpop.f32.mrb[0].mxu0
  %v1873 = vadd.f32 0.0, %v1872
  %1874 = vdwg.mxu0
  %v1875 = vadd.f32 %v1640, %v1751
  %v1876 = vadd.f32 %v1641, %v1753
  %v1877 = vadd.f32 %v1642, %v1804
  %v1878 = vadd.f32 %v1643, %v1806
  %v1879 = vadd.f32 %v1644, %v1857
  %v1880 = vadd.f32 %v1645, %v1859
  %v1881 = vadd.f32 %v1646, %v1755
  %v1882 = vadd.f32 %v1647, %v1757
  %v1883 = vadd.f32 %v1648, %v1808
  %v1884 = vadd.f32 %v1649, %v1810
  %v1885 = vadd.f32 %v1650, %v1861
  %v1886 = vadd.f32 %v1651, %v1863
  %v1887 = vadd.f32 %v1652, %v1761
  %v1888 = vadd.f32 %v1653, %v1763
  %v1889 = vadd.f32 %v1654, %v1814
  %v1890 = vadd.f32 %v1655, %v1816
  %v1891 = vadd.f32 %v1656, %v1867
  %v1892 = vadd.f32 %v1657, %v1869
  %v1893 = vadd.f32 %v1658, %v1765
  %v1894 = vadd.f32 %v1659, %v1767
  %v1895 = vadd.f32 %v1660, %v1818
  %v1896 = vadd.f32 %v1661, %v1820
  %v1897 = vadd.f32 %v1662, %v1871
  %v1898 = vadd.f32 %v1663, %v1873
  %v1903 = vunpack.c.l.b16 %v52
  %v1904 = vunpack.c.l.b16 %v53
  %v1905 = vunpack.c.l.b16 %v54
  %v1906 = vunpack.c.l.b16 %v55
  %v1907 = vpack.c.b16 %v1904, %v1903
  %v1908 = vpack.c.b16 %v1906, %v1905
  %1909 = vrot.lane.b32.xlu0 %v75, 90
  %v1910 = vpop.permute.xlu0 %1909
  %1911 = vrot.lane.b32.xlu0 %v83, 90
  %v1912 = vpop.permute.xlu0 %1911
  %1913 = vrot.lane.b32.xlu0 %v82, 90
  %v1914 = vpop.permute.xlu0 %1913
  %1915 = vrot.lane.b32.xlu0 %v84, 90
  %v1916 = vpop.permute.xlu0 %1915
  %1917 = vrot.lane.b32.xlu0 %v91, 90
  %v1918 = vpop.permute.xlu0 %1917
  %1919 = vrot.lane.b32.xlu0 %v92, 90
  %v1920 = vpop.permute.xlu0 %1919
  %vm1921 = vcmask 736256
  %v1922 = vsel %vm1921, %v1910, %v1912
  %v1923 = vsel %vm1921, %v1912, %v1914
  %v1924 = vsel %vm1921, %v1914, %v1916
  %v1925 = vsel %vm1921, %v1916, %v1918
  %v1926 = vsel %vm1921, %v1918, %v1920
  %v1928 = vsel %vm111, %v1907, 0
  %v1931 = vsel %vm111, %v1908, 0
  %v1934 = vsel %vm118, %v1922, 0
  %v1937 = vsel %vm118, %v1923, 0
  %v1940 = vsel %vm118, %v1924, 0
  %v1943 = vsel %vm118, %v1925, 0
  %v1946 = vsel %vm118, %v1926, 0
  %v1949 = vsel %vm118, %v1920, 0
  %1951 = vmatprep.subr.bf16.mxu0 %v1937
  %1952 = vmatpush1.bf16.msra.mxu0 %v1934
  %1953 = vmatprep.subr.bf16.mxu0 0
  %1954 = vmatpush1.bf16.msra.mxu0 0
  %1955 = vmatprep.subr.bf16.mxu0 0
  %1956 = vmatpush1.bf16.msra.mxu0 0
  %1957 = vmatprep.subr.bf16.mxu0 0
  %1958 = vmatpush1.bf16.msra.mxu0 0
  %1959 = vmatprep.subr.bf16.mxu0 0
  %1960 = vmatpush1.bf16.msra.mxu0 0
  %1961 = vmatprep.subr.bf16.mxu0 0
  %1962 = vmatpush1.bf16.msra.mxu0 0
  %1963 = vmatprep.subr.bf16.mxu0 0
  %1964 = vmatpush1.bf16.msra.mxu0 0
  %1965 = vmatprep.subr.bf16.mxu0 0
  %1966 = vmatpush1.bf16.msra.mxu0 0
  %1967 = vmatprep.subr.bf16.mxu0 0
  %1968 = vmatpush1.bf16.msra.mxu0 0
  %1969 = vmatprep.subr.bf16.mxu0 0
  %1970 = vmatpush1.bf16.msra.mxu0 0
  %1971 = vmatprep.subr.bf16.mxu0 0
  %1972 = vmatpush1.bf16.msra.mxu0 0
  %1973 = vmatprep.subr.bf16.mxu0 0
  %1974 = vmatpush1.bf16.msra.mxu0 0
  %1975 = vmatprep.subr.bf16.mxu0 0
  %1976 = vmatpush1.bf16.msra.mxu0 0
  %1977 = vmatprep.subr.bf16.mxu0 0
  %1978 = vmatpush1.bf16.msra.mxu0 0
  %1979 = vmatprep.subr.bf16.mxu0 0
  %1980 = vmatpush1.bf16.msra.mxu0 0
  %1981 = vmatprep.subr.bf16.mxu0 0
  %1982 = vmatpush1.bf16.msra.mxu0 0
  %1983 = vmatprep.mubr.bf16.mxu0 0
  %1984 = vmatmul.mubr.bf16.gmra.mrb[0].mxu0 %v1928
  %v1985 = vpop.f32.mrb[0].mxu0
  %v1986 = vadd.f32 0.0, %v1985
  %v1987 = vpop.f32.mrb[0].mxu0
  %v1988 = vadd.f32 0.0, %v1987
  %v1989 = vpop.f32.mrb[0].mxu0
  %v1990 = vadd.f32 0.0, %v1989
  %v1991 = vpop.f32.mrb[0].mxu0
  %v1992 = vadd.f32 0.0, %v1991
  %1993 = vmatprep.mubr.bf16.mxu0 0
  %1994 = vmatmul.mubr.bf16.gmra.mrb[0].mxu0 %v1931
  %v1995 = vpop.f32.mrb[0].mxu0
  %v1996 = vadd.f32 0.0, %v1995
  %v1997 = vpop.f32.mrb[0].mxu0
  %v1998 = vadd.f32 0.0, %v1997
  %v1999 = vpop.f32.mrb[0].mxu0
  %v2000 = vadd.f32 0.0, %v1999
  %v2001 = vpop.f32.mrb[0].mxu0
  %v2002 = vadd.f32 0.0, %v2001
  %2003 = vdwg.mxu0
  %2004 = vmatprep.subr.bf16.mxu0 %v1943
  %2005 = vmatpush1.bf16.msra.mxu0 %v1940
  %2006 = vmatprep.subr.bf16.mxu0 0
  %2007 = vmatpush1.bf16.msra.mxu0 0
  %2008 = vmatprep.subr.bf16.mxu0 0
  %2009 = vmatpush1.bf16.msra.mxu0 0
  %2010 = vmatprep.subr.bf16.mxu0 0
  %2011 = vmatpush1.bf16.msra.mxu0 0
  %2012 = vmatprep.subr.bf16.mxu0 0
  %2013 = vmatpush1.bf16.msra.mxu0 0
  %2014 = vmatprep.subr.bf16.mxu0 0
  %2015 = vmatpush1.bf16.msra.mxu0 0
  %2016 = vmatprep.subr.bf16.mxu0 0
  %2017 = vmatpush1.bf16.msra.mxu0 0
  %2018 = vmatprep.subr.bf16.mxu0 0
  %2019 = vmatpush1.bf16.msra.mxu0 0
  %2020 = vmatprep.subr.bf16.mxu0 0
  %2021 = vmatpush1.bf16.msra.mxu0 0
  %2022 = vmatprep.subr.bf16.mxu0 0
  %2023 = vmatpush1.bf16.msra.mxu0 0
  %2024 = vmatprep.subr.bf16.mxu0 0
  %2025 = vmatpush1.bf16.msra.mxu0 0
  %2026 = vmatprep.subr.bf16.mxu0 0
  %2027 = vmatpush1.bf16.msra.mxu0 0
  %2028 = vmatprep.subr.bf16.mxu0 0
  %2029 = vmatpush1.bf16.msra.mxu0 0
  %2030 = vmatprep.subr.bf16.mxu0 0
  %2031 = vmatpush1.bf16.msra.mxu0 0
  %2032 = vmatprep.subr.bf16.mxu0 0
  %2033 = vmatpush1.bf16.msra.mxu0 0
  %2034 = vmatprep.subr.bf16.mxu0 0
  %2035 = vmatpush1.bf16.msra.mxu0 0
  %2036 = vmatprep.mubr.bf16.mxu0 0
  %2037 = vmatmul.mubr.bf16.gmra.mrb[0].mxu0 %v1928
  %v2038 = vpop.f32.mrb[0].mxu0
  %v2039 = vadd.f32 0.0, %v2038
  %v2040 = vpop.f32.mrb[0].mxu0
  %v2041 = vadd.f32 0.0, %v2040
  %v2042 = vpop.f32.mrb[0].mxu0
  %v2043 = vadd.f32 0.0, %v2042
  %v2044 = vpop.f32.mrb[0].mxu0
  %v2045 = vadd.f32 0.0, %v2044
  %2046 = vmatprep.mubr.bf16.mxu0 0
  %2047 = vmatmul.mubr.bf16.gmra.mrb[0].mxu0 %v1931
  %v2048 = vpop.f32.mrb[0].mxu0
  %v2049 = vadd.f32 0.0, %v2048
  %v2050 = vpop.f32.mrb[0].mxu0
  %v2051 = vadd.f32 0.0, %v2050
  %v2052 = vpop.f32.mrb[0].mxu0
  %v2053 = vadd.f32 0.0, %v2052
  %v2054 = vpop.f32.mrb[0].mxu0
  %v2055 = vadd.f32 0.0, %v2054
  %2056 = vdwg.mxu0
  %2057 = vmatprep.subr.bf16.mxu0 %v1949
  %2058 = vmatpush1.bf16.msra.mxu0 %v1946
  %2059 = vmatprep.subr.bf16.mxu0 0
  %2060 = vmatpush1.bf16.msra.mxu0 0
  %2061 = vmatprep.subr.bf16.mxu0 0
  %2062 = vmatpush1.bf16.msra.mxu0 0
  %2063 = vmatprep.subr.bf16.mxu0 0
  %2064 = vmatpush1.bf16.msra.mxu0 0
  %2065 = vmatprep.subr.bf16.mxu0 0
  %2066 = vmatpush1.bf16.msra.mxu0 0
  %2067 = vmatprep.subr.bf16.mxu0 0
  %2068 = vmatpush1.bf16.msra.mxu0 0
  %2069 = vmatprep.subr.bf16.mxu0 0
  %2070 = vmatpush1.bf16.msra.mxu0 0
  %2071 = vmatprep.subr.bf16.mxu0 0
  %2072 = vmatpush1.bf16.msra.mxu0 0
  %2073 = vmatprep.subr.bf16.mxu0 0
  %2074 = vmatpush1.bf16.msra.mxu0 0
  %2075 = vmatprep.subr.bf16.mxu0 0
  %2076 = vmatpush1.bf16.msra.mxu0 0
  %2077 = vmatprep.subr.bf16.mxu0 0
  %2078 = vmatpush1.bf16.msra.mxu0 0
  %2079 = vmatprep.subr.bf16.mxu0 0
  %2080 = vmatpush1.bf16.msra.mxu0 0
  %2081 = vmatprep.subr.bf16.mxu0 0
  %2082 = vmatpush1.bf16.msra.mxu0 0
  %2083 = vmatprep.subr.bf16.mxu0 0
  %2084 = vmatpush1.bf16.msra.mxu0 0
  %2085 = vmatprep.subr.bf16.mxu0 0
  %2086 = vmatpush1.bf16.msra.mxu0 0
  %2087 = vmatprep.subr.bf16.mxu0 0
  %2088 = vmatpush1.bf16.msra.mxu0 0
  %2089 = vmatprep.mubr.bf16.mxu0 0
  %2090 = vmatmul.mubr.bf16.gmra.mrb[0].mxu0 %v1928
  %v2091 = vpop.f32.mrb[0].mxu0
  %v2092 = vadd.f32 0.0, %v2091
  %v2093 = vpop.f32.mrb[0].mxu0
  %v2094 = vadd.f32 0.0, %v2093
  %v2095 = vpop.f32.mrb[0].mxu0
  %v2096 = vadd.f32 0.0, %v2095
  %v2097 = vpop.f32.mrb[0].mxu0
  %v2098 = vadd.f32 0.0, %v2097
  %2099 = vmatprep.mubr.bf16.mxu0 0
  %2100 = vmatmul.mubr.bf16.gmra.mrb[0].mxu0 %v1931
  %v2101 = vpop.f32.mrb[0].mxu0
  %v2102 = vadd.f32 0.0, %v2101
  %v2103 = vpop.f32.mrb[0].mxu0
  %v2104 = vadd.f32 0.0, %v2103
  %v2105 = vpop.f32.mrb[0].mxu0
  %v2106 = vadd.f32 0.0, %v2105
  %v2107 = vpop.f32.mrb[0].mxu0
  %v2108 = vadd.f32 0.0, %v2107
  %2109 = vdwg.mxu0
  %v2110 = vadd.f32 %v1875, %v1986
  %v2111 = vadd.f32 %v1876, %v1988
  %v2112 = vadd.f32 %v1877, %v2039
  %v2113 = vadd.f32 %v1878, %v2041
  %v2114 = vadd.f32 %v1879, %v2092
  %v2115 = vadd.f32 %v1880, %v2094
  %v2116 = vadd.f32 %v1881, %v1990
  %v2117 = vadd.f32 %v1882, %v1992
  %v2118 = vadd.f32 %v1883, %v2043
  %v2119 = vadd.f32 %v1884, %v2045
  %v2120 = vadd.f32 %v1885, %v2096
  %v2121 = vadd.f32 %v1886, %v2098
  %v2122 = vadd.f32 %v1887, %v1996
  %v2123 = vadd.f32 %v1888, %v1998
  %v2124 = vadd.f32 %v1889, %v2049
  %v2125 = vadd.f32 %v1890, %v2051
  %v2126 = vadd.f32 %v1891, %v2102
  %v2127 = vadd.f32 %v1892, %v2104
  %v2128 = vadd.f32 %v1893, %v2000
  %v2129 = vadd.f32 %v1894, %v2002
  %v2130 = vadd.f32 %v1895, %v2053
  %v2131 = vadd.f32 %v1896, %v2055
  %v2132 = vadd.f32 %v1897, %v2106
  %v2133 = vadd.f32 %v1898, %v2108
  %v2134 = vld [vmem:[%s2] sm:$0xff]
  %v2135 = vld [vmem:[%s2 + $0x8] sm:$0xff]
  %v2136 = vld [vmem:[%s2 + $0x10] sm:$0xff]
  %v2137 = vld [vmem:[%s2 + $0x18] sm:$0xff]
  %2139 = vset.pattern.permute.xlu0 0
  %2140 = vperm.xlu0 %2139, %v2134
  %v2141 = vpop.permute.xlu0 %2140
  %2144 = vset.pattern.permute.xlu0 0
  %2145 = vperm.xlu0 %2144, %v2135
  %v2146 = vpop.permute.xlu0 %2145
  %2149 = vset.pattern.permute.xlu0 0
  %2150 = vperm.xlu0 %2149, %v2136
  %v2151 = vpop.permute.xlu0 %2150
  %2154 = vset.pattern.permute.xlu0 0
  %2155 = vperm.xlu0 %2154, %v2137
  %v2156 = vpop.permute.xlu0 %2155
  %v2158 = vadd.f32 %v2110, %v2141
  %v2159 = vadd.f32 %v2111, %v2141
  %v2160 = vadd.f32 %v2112, %v2141
  %v2161 = vadd.f32 %v2113, %v2141
  %v2162 = vadd.f32 %v2114, %v2141
  %v2163 = vadd.f32 %v2115, %v2141
  %v2164 = vadd.f32 %v2116, %v2146
  %v2165 = vadd.f32 %v2117, %v2146
  %v2166 = vadd.f32 %v2118, %v2146
  %v2167 = vadd.f32 %v2119, %v2146
  %v2168 = vadd.f32 %v2120, %v2146
  %v2169 = vadd.f32 %v2121, %v2146
  %v2170 = vadd.f32 %v2122, %v2151
  %v2171 = vadd.f32 %v2123, %v2151
  %v2172 = vadd.f32 %v2124, %v2151
  %v2173 = vadd.f32 %v2125, %v2151
  %v2174 = vadd.f32 %v2126, %v2151
  %v2175 = vadd.f32 %v2127, %v2151
  %v2176 = vadd.f32 %v2128, %v2156
  %v2177 = vadd.f32 %v2129, %v2156
  %v2178 = vadd.f32 %v2130, %v2156
  %v2179 = vadd.f32 %v2131, %v2156
  %v2180 = vadd.f32 %v2132, %v2156
  %v2181 = vadd.f32 %v2133, %v2156
  %v2182 = vmax.f32 %v2158, 0.0
  %v2183 = vmax.f32 %v2159, 0.0
  %v2184 = vmax.f32 %v2160, 0.0
  %v2185 = vmax.f32 %v2161, 0.0
  %v2186 = vmax.f32 %v2162, 0.0
  %v2187 = vmax.f32 %v2163, 0.0
  %v2188 = vmax.f32 %v2164, 0.0
  %v2189 = vmax.f32 %v2165, 0.0
  %v2190 = vmax.f32 %v2166, 0.0
  %v2191 = vmax.f32 %v2167, 0.0
  %v2192 = vmax.f32 %v2168, 0.0
  %v2193 = vmax.f32 %v2169, 0.0
  %v2194 = vmax.f32 %v2170, 0.0
  %v2195 = vmax.f32 %v2171, 0.0
  %v2196 = vmax.f32 %v2172, 0.0
  %v2197 = vmax.f32 %v2173, 0.0
  %v2198 = vmax.f32 %v2174, 0.0
  %v2199 = vmax.f32 %v2175, 0.0
  %v2200 = vmax.f32 %v2176, 0.0
  %v2201 = vmax.f32 %v2177, 0.0
  %v2202 = vmax.f32 %v2178, 0.0
  %v2203 = vmax.f32 %v2179, 0.0
  %v2204 = vmax.f32 %v2180, 0.0
  %v2205 = vmax.f32 %v2181, 0.0
  %v2206 = vld [vmem:[%s3] sm:$0xff]
  %v2207 = vld [vmem:[%s3 + $0x8] sm:$0xff]
  %v2208 = vld [vmem:[%s3 + $0x10] sm:$0xff]
  %v2209 = vld [vmem:[%s3 + $0x18] sm:$0xff]
  %v2210 = vld [vmem:[%s3 + $0x20] sm:$0xff]
  %v2211 = vld [vmem:[%s3 + $0x28] sm:$0xff]
  %v2212 = vld [vmem:[%s3 + $0x30] sm:$0xff]
  %v2213 = vld [vmem:[%s3 + $0x38] sm:$0xff]
  %v2214 = vld [vmem:[%s3 + $0x40] sm:$0xff]
  %v2215 = vld [vmem:[%s3 + $0x48] sm:$0xff]
  %v2216 = vld [vmem:[%s3 + $0x50] sm:$0xff]
  %v2217 = vld [vmem:[%s3 + $0x58] sm:$0xff]
  %v2218 = vld [vmem:[%s3 + $0x60] sm:$0xff]
  %v2219 = vld [vmem:[%s3 + $0x68] sm:$0xff]
  %v2220 = vld [vmem:[%s3 + $0x70] sm:$0xff]
  %v2221 = vld [vmem:[%s3 + $0x78] sm:$0xff]
  %v2222 = vld [vmem:[%s3 + $0x80] sm:$0xff]
  %v2223 = vld [vmem:[%s3 + $0x88] sm:$0xff]
  %v2224 = vld [vmem:[%s3 + $0x90] sm:$0xff]
  %v2225 = vld [vmem:[%s3 + $0x98] sm:$0xff]
  %v2226 = vld [vmem:[%s3 + $0xa0] sm:$0xff]
  %v2227 = vld [vmem:[%s3 + $0xa8] sm:$0xff]
  %v2228 = vld [vmem:[%s3 + $0xb0] sm:$0xff]
  %v2229 = vld [vmem:[%s3 + $0xb8] sm:$0xff]
  %v2230 = vld [vmem:[%s3 + $0xc0] sm:$0xff]
  %v2231 = vld [vmem:[%s3 + $0xc8] sm:$0xff]
  %v2232 = vld [vmem:[%s3 + $0xd0] sm:$0xff]
  %v2233 = vld [vmem:[%s3 + $0xd8] sm:$0xff]
  %v2234 = vld [vmem:[%s3 + $0xe0] sm:$0xff]
  %v2235 = vld [vmem:[%s3 + $0xe8] sm:$0xff]
  %v2236 = vld [vmem:[%s3 + $0xf0] sm:$0xff]
  %v2237 = vld [vmem:[%s3 + $0xf8] sm:$0xff]
  %v2238 = vld [vmem:[%s3 + $0x100] sm:$0xff]
  %v2239 = vld [vmem:[%s3 + $0x108] sm:$0xff]
  %v2240 = vld [vmem:[%s3 + $0x110] sm:$0xff]
  %v2241 = vld [vmem:[%s3 + $0x118] sm:$0xff]
  %v2242 = vld [vmem:[%s3 + $0x120] sm:$0xff]
  %v2243 = vld [vmem:[%s3 + $0x128] sm:$0xff]
  %v2244 = vld [vmem:[%s3 + $0x130] sm:$0xff]
  %v2245 = vld [vmem:[%s3 + $0x138] sm:$0xff]
  %v2246 = vld [vmem:[%s3 + $0x140] sm:$0xff]
  %v2247 = vld [vmem:[%s3 + $0x148] sm:$0xff]
  %v2248 = vld [vmem:[%s3 + $0x150] sm:$0xff]
  %v2249 = vld [vmem:[%s3 + $0x158] sm:$0xff]
  %v2250 = vld [vmem:[%s3 + $0x160] sm:$0xff]
  %v2251 = vld [vmem:[%s3 + $0x168] sm:$0xff]
  %v2252 = vld [vmem:[%s3 + $0x170] sm:$0xff]
  %v2253 = vld [vmem:[%s3 + $0x178] sm:$0xff]
  %v2254 = vld [vmem:[%s3 + $0x180] sm:$0xff]
  %v2255 = vld [vmem:[%s3 + $0x188] sm:$0xff]
  %v2256 = vld [vmem:[%s3 + $0x190] sm:$0xff]
  %v2257 = vld [vmem:[%s3 + $0x198] sm:$0xff]
  %v2258 = vld [vmem:[%s3 + $0x1a0] sm:$0xff]
  %v2259 = vld [vmem:[%s3 + $0x1a8] sm:$0xff]
  %v2260 = vld [vmem:[%s3 + $0x1b0] sm:$0xff]
  %v2261 = vld [vmem:[%s3 + $0x1b8] sm:$0xff]
  %v2262 = vld [vmem:[%s3 + $0x1c0] sm:$0xff]
  %v2263 = vld [vmem:[%s3 + $0x1c8] sm:$0xff]
  %v2264 = vld [vmem:[%s3 + $0x1d0] sm:$0xff]
  %v2265 = vld [vmem:[%s3 + $0x1d8] sm:$0xff]
  %v2266 = vld [vmem:[%s3 + $0x1e0] sm:$0xff]
  %v2267 = vld [vmem:[%s3 + $0x1e8] sm:$0xff]
  %v2268 = vld [vmem:[%s3 + $0x1f0] sm:$0xff]
  %v2269 = vld [vmem:[%s3 + $0x1f8] sm:$0xff]
  %v2270 = vld [vmem:[%s3 + $0x200] sm:$0xff]
  %v2271 = vld [vmem:[%s3 + $0x208] sm:$0xff]
  %v2272 = vld [vmem:[%s3 + $0x210] sm:$0xff]
  %v2273 = vld [vmem:[%s3 + $0x218] sm:$0xff]
  %v2274 = vld [vmem:[%s3 + $0x220] sm:$0xff]
  %v2275 = vld [vmem:[%s3 + $0x228] sm:$0xff]
  %v2276 = vld [vmem:[%s3 + $0x230] sm:$0xff]
  %v2277 = vld [vmem:[%s3 + $0x238] sm:$0xff]
  %v2278 = vld [vmem:[%s3 + $0x240] sm:$0xff]
  %v2279 = vld [vmem:[%s3 + $0x248] sm:$0xff]
  %v2280 = vld [vmem:[%s3 + $0x250] sm:$0xff]
  %v2281 = vld [vmem:[%s3 + $0x258] sm:$0xff]
  %v2282 = vld [vmem:[%s3 + $0x260] sm:$0xff]
  %v2283 = vld [vmem:[%s3 + $0x268] sm:$0xff]
  %v2284 = vld [vmem:[%s3 + $0x270] sm:$0xff]
  %v2285 = vld [vmem:[%s3 + $0x278] sm:$0xff]
  %v2286 = vld [vmem:[%s3 + $0x280] sm:$0xff]
  %v2287 = vld [vmem:[%s3 + $0x288] sm:$0xff]
  %v2288 = vld [vmem:[%s3 + $0x290] sm:$0xff]
  %v2289 = vld [vmem:[%s3 + $0x298] sm:$0xff]
  %vm2290 = vcmask 261120
  %v2292 = vsel %vm2290, %v2187, 0
  %v2295 = vsel %vm2290, %v2193, 0
  %v2298 = vsel %vm2290, %v2199, 0
  %v2301 = vsel %vm2290, %v2205, 0
  %2303 = vmatprep.subr.mxu0 0.0
  %2304 = vmatpush1.msra.mxu0 %v2206
  %2305 = vmatprep.subr.mxu0 0.0
  %2306 = vmatpush1.msra.mxu0 %v2207
  %2307 = vmatprep.subr.mxu0 0.0
  %2308 = vmatpush1.msra.mxu0 %v2208
  %2309 = vmatprep.subr.mxu0 0.0
  %2310 = vmatpush1.msra.mxu0 %v2209
  %2311 = vmatprep.subr.mxu0 0.0
  %2312 = vmatpush1.msra.mxu0 %v2210
  %2313 = vmatprep.subr.mxu0 0.0
  %2314 = vmatpush1.msra.mxu0 %v2211
  %2315 = vmatprep.subr.mxu0 0.0
  %2316 = vmatpush1.msra.mxu0 %v2212
  %2317 = vmatprep.subr.mxu0 0.0
  %2318 = vmatpush1.msra.mxu0 %v2213
  %2319 = vmatprep.subr.mxu0 0.0
  %2320 = vmatpush1.msra.mxu0 %v2214
  %2321 = vmatprep.subr.mxu0 0.0
  %2322 = vmatpush1.msra.mxu0 %v2215
  %2323 = vmatprep.subr.mxu0 0.0
  %2324 = vmatpush1.msra.mxu0 %v2216
  %2325 = vmatprep.subr.mxu0 0.0
  %2326 = vmatpush1.msra.mxu0 %v2217
  %2327 = vmatprep.subr.mxu0 0.0
  %2328 = vmatpush1.msra.mxu0 %v2218
  %2329 = vmatprep.subr.mxu0 0.0
  %2330 = vmatpush1.msra.mxu0 %v2219
  %2331 = vmatprep.subr.mxu0 0.0
  %2332 = vmatpush1.msra.mxu0 %v2220
  %2333 = vmatprep.subr.mxu0 0.0
  %2334 = vmatpush1.msra.mxu0 %v2221
  %2335 = vmatprep.subr.mxu0 0.0
  %2336 = vmatpush1.msra.mxu0 %v2222
  %2337 = vmatprep.subr.mxu0 0.0
  %2338 = vmatpush1.msra.mxu0 %v2223
  %2339 = vmatprep.subr.mxu0 0.0
  %2340 = vmatpush1.msra.mxu0 %v2224
  %2341 = vmatprep.subr.mxu0 0.0
  %2342 = vmatpush1.msra.mxu0 %v2225
  %2343 = vmatprep.subr.mxu0 0.0
  %2344 = vmatpush1.msra.mxu0 %v2226
  %2345 = vmatprep.subr.mxu0 0.0
  %2346 = vmatpush1.msra.mxu0 %v2227
  %2347 = vmatprep.subr.mxu0 0.0
  %2348 = vmatpush1.msra.mxu0 %v2228
  %2349 = vmatprep.subr.mxu0 0.0
  %2350 = vmatpush1.msra.mxu0 %v2229
  %2351 = vmatprep.subr.mxu0 0.0
  %2352 = vmatpush1.msra.mxu0 %v2230
  %2353 = vmatprep.subr.mxu0 0.0
  %2354 = vmatpush1.msra.mxu0 %v2231
  %2355 = vmatprep.subr.mxu0 0.0
  %2356 = vmatpush1.msra.mxu0 %v2232
  %2357 = vmatprep.subr.mxu0 0.0
  %2358 = vmatpush1.msra.mxu0 %v2233
  %2359 = vmatprep.subr.mxu0 0.0
  %2360 = vmatpush1.msra.mxu0 %v2234
  %2361 = vmatprep.subr.mxu0 0.0
  %2362 = vmatpush1.msra.mxu0 %v2235
  %2363 = vmatprep.subr.mxu0 0.0
  %2364 = vmatpush1.msra.mxu0 %v2236
  %2365 = vmatprep.subr.mxu0 0.0
  %2366 = vmatpush1.msra.mxu0 %v2237
  %2367 = vmatprep.mubr.f32.mxu0 %v2183
  %2368 = vmatmul.mubr.f32.gmra.mrb[0].mxu0 %v2182
  %v2369 = vpop.f32.mrb[0].mxu0
  %v2370 = vadd.f32 0.0, %v2369
  %v2371 = vpop.f32.mrb[0].mxu0
  %2372 = vmatprep.mubr.f32.mxu0 %v2189
  %2373 = vmatmul.mubr.f32.gmra.mrb[0].mxu0 %v2188
  %v2374 = vpop.f32.mrb[0].mxu0
  %v2375 = vadd.f32 0.0, %v2374
  %v2376 = vpop.f32.mrb[0].mxu0
  %2377 = vmatprep.mubr.f32.mxu0 %v2195
  %2378 = vmatmul.mubr.f32.gmra.mrb[0].mxu0 %v2194
  %v2379 = vpop.f32.mrb[0].mxu0
  %v2380 = vadd.f32 0.0, %v2379
  %v2381 = vpop.f32.mrb[0].mxu0
  %2382 = vmatprep.mubr.f32.mxu0 %v2201
  %2383 = vmatmul.mubr.f32.gmra.mrb[0].mxu0 %v2200
  %v2384 = vpop.f32.mrb[0].mxu0
  %v2385 = vadd.f32 0.0, %v2384
  %v2386 = vpop.f32.mrb[0].mxu0
  %2387 = vdwg.mxu0
  %2388 = vmatprep.subr.mxu0 0.0
  %2389 = vmatpush1.msra.mxu0 %v2238
  %2390 = vmatprep.subr.mxu0 0.0
  %2391 = vmatpush1.msra.mxu0 %v2239
  %2392 = vmatprep.subr.mxu0 0.0
  %2393 = vmatpush1.msra.mxu0 %v2240
  %2394 = vmatprep.subr.mxu0 0.0
  %2395 = vmatpush1.msra.mxu0 %v2241
  %2396 = vmatprep.subr.mxu0 0.0
  %2397 = vmatpush1.msra.mxu0 %v2242
  %2398 = vmatprep.subr.mxu0 0.0
  %2399 = vmatpush1.msra.mxu0 %v2243
  %2400 = vmatprep.subr.mxu0 0.0
  %2401 = vmatpush1.msra.mxu0 %v2244
  %2402 = vmatprep.subr.mxu0 0.0
  %2403 = vmatpush1.msra.mxu0 %v2245
  %2404 = vmatprep.subr.mxu0 0.0
  %2405 = vmatpush1.msra.mxu0 %v2246
  %2406 = vmatprep.subr.mxu0 0.0
  %2407 = vmatpush1.msra.mxu0 %v2247
  %2408 = vmatprep.subr.mxu0 0.0
  %2409 = vmatpush1.msra.mxu0 %v2248
  %2410 = vmatprep.subr.mxu0 0.0
  %2411 = vmatpush1.msra.mxu0 %v2249
  %2412 = vmatprep.subr.mxu0 0.0
  %2413 = vmatpush1.msra.mxu0 %v2250
  %2414 = vmatprep.subr.mxu0 0.0
  %2415 = vmatpush1.msra.mxu0 %v2251
  %2416 = vmatprep.subr.mxu0 0.0
  %2417 = vmatpush1.msra.mxu0 %v2252
  %2418 = vmatprep.subr.mxu0 0.0
  %2419 = vmatpush1.msra.mxu0 %v2253
  %2420 = vmatprep.subr.mxu0 0.0
  %2421 = vmatpush1.msra.mxu0 %v2254
  %2422 = vmatprep.subr.mxu0 0.0
  %2423 = vmatpush1.msra.mxu0 %v2255
  %2424 = vmatprep.subr.mxu0 0.0
  %2425 = vmatpush1.msra.mxu0 %v2256
  %2426 = vmatprep.subr.mxu0 0.0
  %2427 = vmatpush1.msra.mxu0 %v2257
  %2428 = vmatprep.subr.mxu0 0.0
  %2429 = vmatpush1.msra.mxu0 %v2258
  %2430 = vmatprep.subr.mxu0 0.0
  %2431 = vmatpush1.msra.mxu0 %v2259
  %2432 = vmatprep.subr.mxu0 0.0
  %2433 = vmatpush1.msra.mxu0 %v2260
  %2434 = vmatprep.subr.mxu0 0.0
  %2435 = vmatpush1.msra.mxu0 %v2261
  %2436 = vmatprep.subr.mxu0 0.0
  %2437 = vmatpush1.msra.mxu0 %v2262
  %2438 = vmatprep.subr.mxu0 0.0
  %2439 = vmatpush1.msra.mxu0 %v2263
  %2440 = vmatprep.subr.mxu0 0.0
  %2441 = vmatpush1.msra.mxu0 %v2264
  %2442 = vmatprep.subr.mxu0 0.0
  %2443 = vmatpush1.msra.mxu0 %v2265
  %2444 = vmatprep.subr.mxu0 0.0
  %2445 = vmatpush1.msra.mxu0 %v2266
  %2446 = vmatprep.subr.mxu0 0.0
  %2447 = vmatpush1.msra.mxu0 %v2267
  %2448 = vmatprep.subr.mxu0 0.0
  %2449 = vmatpush1.msra.mxu0 %v2268
  %2450 = vmatprep.subr.mxu0 0.0
  %2451 = vmatpush1.msra.mxu0 %v2269
  %2452 = vmatprep.mubr.f32.mxu0 %v2185
  %2453 = vmatmul.mubr.f32.gmra.mrb[0].mxu0 %v2184
  %v2454 = vpop.f32.mrb[0].mxu0
  %v2455 = vadd.f32 %v2370, %v2454
  %v2456 = vpop.f32.mrb[0].mxu0
  %2457 = vmatprep.mubr.f32.mxu0 %v2191
  %2458 = vmatmul.mubr.f32.gmra.mrb[0].mxu0 %v2190
  %v2459 = vpop.f32.mrb[0].mxu0
  %v2460 = vadd.f32 %v2375, %v2459
  %v2461 = vpop.f32.mrb[0].mxu0
  %2462 = vmatprep.mubr.f32.mxu0 %v2197
  %2463 = vmatmul.mubr.f32.gmra.mrb[0].mxu0 %v2196
  %v2464 = vpop.f32.mrb[0].mxu0
  %v2465 = vadd.f32 %v2380, %v2464
  %v2466 = vpop.f32.mrb[0].mxu0
  %2467 = vmatprep.mubr.f32.mxu0 %v2203
  %2468 = vmatmul.mubr.f32.gmra.mrb[0].mxu0 %v2202
  %v2469 = vpop.f32.mrb[0].mxu0
  %v2470 = vadd.f32 %v2385, %v2469
  %v2471 = vpop.f32.mrb[0].mxu0
  %2472 = vdwg.mxu0
  %2473 = vmatprep.subr.mxu0 0.0
  %2474 = vmatpush1.msra.mxu0 %v2270
  %2475 = vmatprep.subr.mxu0 0.0
  %2476 = vmatpush1.msra.mxu0 %v2271
  %2477 = vmatprep.subr.mxu0 0.0
  %2478 = vmatpush1.msra.mxu0 %v2272
  %2479 = vmatprep.subr.mxu0 0.0
  %2480 = vmatpush1.msra.mxu0 %v2273
  %2481 = vmatprep.subr.mxu0 0.0
  %2482 = vmatpush1.msra.mxu0 %v2274
  %2483 = vmatprep.subr.mxu0 0.0
  %2484 = vmatpush1.msra.mxu0 %v2275
  %2485 = vmatprep.subr.mxu0 0.0
  %2486 = vmatpush1.msra.mxu0 %v2276
  %2487 = vmatprep.subr.mxu0 0.0
  %2488 = vmatpush1.msra.mxu0 %v2277
  %2489 = vmatprep.subr.mxu0 0.0
  %2490 = vmatpush1.msra.mxu0 %v2278
  %2491 = vmatprep.subr.mxu0 0.0
  %2492 = vmatpush1.msra.mxu0 %v2279
  %2493 = vmatprep.subr.mxu0 0.0
  %2494 = vmatpush1.msra.mxu0 %v2280
  %2495 = vmatprep.subr.mxu0 0.0
  %2496 = vmatpush1.msra.mxu0 %v2281
  %2497 = vmatprep.subr.mxu0 0.0
  %2498 = vmatpush1.msra.mxu0 %v2282
  %2499 = vmatprep.subr.mxu0 0.0
  %2500 = vmatpush1.msra.mxu0 %v2283
  %2501 = vmatprep.subr.mxu0 0.0
  %2502 = vmatpush1.msra.mxu0 %v2284
  %2503 = vmatprep.subr.mxu0 0.0
  %2504 = vmatpush1.msra.mxu0 %v2285
  %2505 = vmatprep.subr.mxu0 0.0
  %2506 = vmatpush1.msra.mxu0 %v2286
  %2507 = vmatprep.subr.mxu0 0.0
  %2508 = vmatpush1.msra.mxu0 %v2287
  %2509 = vmatprep.subr.mxu0 0.0
  %2510 = vmatpush1.msra.mxu0 %v2288
  %2511 = vmatprep.subr.mxu0 0.0
  %2512 = vmatpush1.msra.mxu0 %v2289
  %2513 = vmatprep.subr.mxu0 0.0
  %2514 = vmatpush1.msra.mxu0 0.0
  %2515 = vmatprep.subr.mxu0 0.0
  %2516 = vmatpush1.msra.mxu0 0.0
  %2517 = vmatprep.subr.mxu0 0.0
  %2518 = vmatpush1.msra.mxu0 0.0
  %2519 = vmatprep.subr.mxu0 0.0
  %2520 = vmatpush1.msra.mxu0 0.0
  %2521 = vmatprep.subr.mxu0 0.0
  %2522 = vmatpush1.msra.mxu0 0.0
  %2523 = vmatprep.subr.mxu0 0.0
  %2524 = vmatpush1.msra.mxu0 0.0
  %2525 = vmatprep.subr.mxu0 0.0
  %2526 = vmatpush1.msra.mxu0 0.0
  %2527 = vmatprep.subr.mxu0 0.0
  %2528 = vmatpush1.msra.mxu0 0.0
  %2529 = vmatprep.subr.mxu0 0.0
  %2530 = vmatpush1.msra.mxu0 0.0
  %2531 = vmatprep.subr.mxu0 0.0
  %2532 = vmatpush1.msra.mxu0 0.0
  %2533 = vmatprep.subr.mxu0 0.0
  %2534 = vmatpush1.msra.mxu0 0.0
  %2535 = vmatprep.subr.mxu0 0.0
  %2536 = vmatpush1.msra.mxu0 0.0
  %2537 = vmatprep.mubr.f32.mxu0 %v2292
  %2538 = vmatmul.mubr.f32.gmra.mrb[0].mxu0 %v2186
  %v2539 = vpop.f32.mrb[0].mxu0
  %v2540 = vadd.f32 %v2455, %v2539
  %v2541 = vpop.f32.mrb[0].mxu0
  %2542 = vmatprep.mubr.f32.mxu0 %v2295
  %2543 = vmatmul.mubr.f32.gmra.mrb[0].mxu0 %v2192
  %v2544 = vpop.f32.mrb[0].mxu0
  %v2545 = vadd.f32 %v2460, %v2544
  %v2546 = vpop.f32.mrb[0].mxu0
  %2547 = vmatprep.mubr.f32.mxu0 %v2298
  %2548 = vmatmul.mubr.f32.gmra.mrb[0].mxu0 %v2198
  %v2549 = vpop.f32.mrb[0].mxu0
  %v2550 = vadd.f32 %v2465, %v2549
  %v2551 = vpop.f32.mrb[0].mxu0
  %2552 = vmatprep.mubr.f32.mxu0 %v2301
  %2553 = vmatmul.mubr.f32.gmra.mrb[0].mxu0 %v2204
  %v2554 = vpop.f32.mrb[0].mxu0
  %v2555 = vadd.f32 %v2470, %v2554
  %v2556 = vpop.f32.mrb[0].mxu0
  %2557 = vdwg.mxu0
  %vm2558 = vcmask 15360
  %2559 = vst.msk [vmem:[%s4] sm:$0xff] %vm2558, %v2540
  %2560 = vst.msk [vmem:[%s4 + $0x8] sm:$0xff] %vm2558, %v2545
  %2561 = vst.msk [vmem:[%s4 + $0x10] sm:$0xff] %vm2558, %v2550
  %2562 = vst.msk [vmem:[%s4 + $0x18] sm:$0xff] %vm2558, %v2555
  // Predicated region
  $region18: #{tpu_custom_call.1} parent=0 // pred_check
    _
  $region19: #{tpu_custom_call.1} parent=0 // pred_check_branch
    %2564 = sbr.rel (0) target = $region21
  $region20: #{tpu_custom_call.1} parent=0 // pred_region
    _
  $region21: #{tpu_custom_call.1} parent=0 // pred_fallthru
    _
  // Predicated region
  $region22: #{tpu_custom_call.1} parent=0 // pred_check
    _
  $region23: #{tpu_custom_call.1} parent=0 // pred_check_branch
    %2566 = sbr.rel (0) target = $region25
  $region24: #{tpu_custom_call.1} parent=0 // pred_region
    _
  $region25: #{tpu_custom_call.1} parent=0 // pred_fallthru
    _

</llo_original>
